<compile_context>
chip_gen: v6e
topology: v6e:2x2x1
jax: 0.10.0
libtpu: 0.0.40
codegen_flags: <defaults>
</compile_context>

<pallas_src>
import functools

import jax
import jax.numpy as jnp
import numpy as np
from jax import lax
from jax.experimental import pallas as pl
from jax.experimental.pallas import tpu as pltpu


def _skew(qer):
    """O(S^2) equivalent of PyTorch's skew(): pad-left(1) -> reshape(S+1,S) -> drop row 0.

    For row i of the result:  Srel[i, j] = W[i, S-1-i+j]  with
    W = [ QEr | zero-column | QEr shifted up by one row ]   (shape (S, 2S+1)).
    Only static slices / concats -> always lowers on Mosaic.
    """
    S = qer.shape[0]
    zero_col = jnp.zeros((S, 1), qer.dtype)
    # Row i+1 of QEr placed at row i; the last (garbage-free zero) row is never selected.
    up = jnp.concatenate([qer[1:, :], jnp.zeros((1, S), qer.dtype)], axis=0)
    w = jnp.concatenate([qer, zero_col, up], axis=1)            # (S, 2S+1)
    rows = [w[i:i + 1, S - 1 - i: 2 * S - 1 - i] for i in range(S)]   # each (1, S)
    return jnp.concatenate(rows, axis=0)                        # (S, S)


def _attn_rel_vec_kernel(x_ref, wq_ref, wk_ref, wv_ref, er_ref, g_ref, b_ref, o_ref,
                         *, num_heads: int, head_dim: int, scale: float):
    S, E = x_ref.shape
    D = head_dim
    nt = (((1,), (1,)), ((), ()))        # contract last dims of both: y = a @ b.T

    x = x_ref[...]                        # (S, E) bf16

    # QKV projections (nn.Linear, no bias): q = x @ Wq^T, computed as an NT matmul so the
    # (out, in) weights are used untransposed.  bf16 operands, f32 accumulation.
    q = lax.dot_general(x, wq_ref[...], nt, preferred_element_type=jnp.float32)
    k = lax.dot_general(x, wk_ref[...], nt, preferred_element_type=jnp.float32)
    v = lax.dot_general(x, wv_ref[...], nt, preferred_element_type=jnp.float32)

    # Fold the softmax scale into q once (applies to both q k^T and skew(q Er^T)).
    q_b = (q * scale).astype(jnp.bfloat16)
    k_b = k.astype(jnp.bfloat16)
    v_b = v.astype(jnp.bfloat16)
    er = er_ref[...]                      # (S, D) bf16

    head_outs = []
    for h in range(num_heads):            # static unroll; heads are small
        lo = h * D
        qh = q_b[:, lo:lo + D]            # (S, D)
        kh = k_b[:, lo:lo + D]
        vh = v_b[:, lo:lo + D]

        # Relative-position logits: QEr = q @ Er^T  -> (S, S), then skew in O(S^2).
        qer = lax.dot_general(qh, er, nt, preferred_element_type=jnp.float32)
        srel = _skew(qer)

        # Content logits: q @ k^T  -> (S, S)
        scores = lax.dot_general(qh, kh, nt, preferred_element_type=jnp.float32)

        a = scores + srel                 # already scaled via q
        a = a - jnp.max(a, axis=-1, keepdims=True)
        e = jnp.exp(a)
        p = e * pl.reciprocal(jnp.sum(e, axis=-1, keepdims=True), approx=True)

        head_outs.append(
            jnp.dot(p.astype(jnp.bfloat16), vh, preferred_element_type=jnp.float32))

    out = jnp.concatenate(head_outs, axis=-1)      # (S, E) f32

    # LayerNorm over the embedding dim (eps matches PyTorch default 1e-5), in f32.
    mean = jnp.mean(out, axis=-1, keepdims=True)
    var = jnp.mean((out - mean) ** 2, axis=-1, keepdims=True)
    normed = (out - mean) * lax.rsqrt(var + 1e-5)
    o_ref[...] = (normed * g_ref[...] + b_ref[...]).astype(o_ref.dtype)


def prepare_params(Wq, Wk, Wv, Er, gamma, beta):
    """Host-side, call ONCE: cast MXU operands to bf16, LN params to f32(1,E)."""
    E = Wq.shape[0]
    return (jnp.asarray(Wq, jnp.bfloat16),
            jnp.asarray(Wk, jnp.bfloat16),
            jnp.asarray(Wv, jnp.bfloat16),
            jnp.asarray(Er, jnp.bfloat16),
            jnp.asarray(gamma, jnp.float32).reshape(1, E),
            jnp.asarray(beta, jnp.float32).reshape(1, E))


@functools.partial(jax.jit, static_argnames=("num_heads",))
def attention_rel_vec(x, wq, wk, wv, er, gamma, beta, *, num_heads):
    B, S, E = x.shape
    D = E // num_heads
    scale = float(E) ** (-0.5)

    kernel = functools.partial(
        _attn_rel_vec_kernel, num_heads=num_heads, head_dim=D, scale=scale)

    full = lambda b: (0, 0)
    return pl.pallas_call(
        kernel,
        out_shape=jax.ShapeDtypeStruct((B, S, E), jnp.float32),
        grid_spec=pltpu.PrefetchScalarGridSpec(
            num_scalar_prefetch=0,
            grid=(B,),
            in_specs=[
                pl.BlockSpec((pl.Squeezed(), S, E), lambda b: (b, 0, 0)),  # x
                pl.BlockSpec((E, E), full),        # Wq (out, in), bf16
                pl.BlockSpec((E, E), full),        # Wk
                pl.BlockSpec((E, E), full),        # Wv
                pl.BlockSpec((S, D), full),        # Er
                pl.BlockSpec((1, E), full),        # LN gamma
                pl.BlockSpec((1, E), full),        # LN beta
            ],
            out_specs=pl.BlockSpec((pl.Squeezed(), S, E), lambda b: (b, 0, 0)),
        ),
        compiler_params=pltpu.CompilerParams(
            dimension_semantics=("parallel",),
            vmem_limit_bytes=32 * 1024 * 1024,
        ),
    )(x.astype(jnp.bfloat16), wq, wk, wv, er, gamma, beta)


def reference_forward(x, Wq, Wk, Wv, Er, gamma, beta, num_heads):
    """Pure-JAX f32 transliteration of the PyTorch forward (for correctness check)."""
    B, S, E = x.shape
    D = E // num_heads
    scale = float(E) ** (-0.5)
    hp = jax.lax.Precision.HIGHEST

    def proj(W):
        return jnp.matmul(x, W.T, precision=hp).reshape(B, S, num_heads, D)

    k = proj(Wk).transpose(0, 2, 3, 1)   # (B, H, D, S)
    v = proj(Wv).transpose(0, 2, 1, 3)   # (B, H, S, D)
    q = proj(Wq).transpose(0, 2, 1, 3)   # (B, H, S, D)

    QEr = jnp.matmul(q, Er.T, precision=hp)                    # (B, H, S, S)
    padded = jnp.pad(QEr, ((0, 0), (0, 0), (0, 0), (1, 0)))    # pad last dim left
    Srel = padded.reshape(B, num_heads, S + 1, S)[:, :, 1:, :]

    attn = (jnp.matmul(q, k, precision=hp) + Srel) * scale
    attn = jax.nn.softmax(attn, axis=-1)
    out = jnp.matmul(attn, v, precision=hp).transpose(0, 2, 1, 3).reshape(B, S, E)

    mean = out.mean(-1, keepdims=True)
    var = ((out - mean) ** 2).mean(-1, keepdims=True)
    return (out - mean) / jnp.sqrt(var + 1e-5) * gamma + beta


if __name__ == "__main__":
    B, S, E, H = 2, 8, 32, 4        # batch, seq_len, emb_size, num_heads
    D = E // H

    key = jax.random.PRNGKey(0)
    kx, kq, kk, kv, ke = jax.random.split(key, 5)

    x = jax.random.normal(kx, (B, S, E), dtype=jnp.float32)
    Wq = jax.random.normal(kq, (E, E), dtype=jnp.float32) * (E ** -0.5)
    Wk = jax.random.normal(kk, (E, E), dtype=jnp.float32) * (E ** -0.5)
    Wv = jax.random.normal(kv, (E, E), dtype=jnp.float32) * (E ** -0.5)
    Er = jax.random.normal(ke, (S, D), dtype=jnp.float32)
    gamma = jnp.ones((E,), dtype=jnp.float32)
    beta = jnp.zeros((E,), dtype=jnp.float32)

    # Host-side prep happens once, outside the call path.
    params = prepare_params(Wq, Wk, Wv, Er, gamma, beta)

    out = jax.block_until_ready(attention_rel_vec(x, *params, num_heads=H))

    ref = jax.block_until_ready(reference_forward(x, Wq, Wk, Wv, Er, gamma, beta, H))
    # bf16 MXU operands + approx reciprocal => slightly looser tolerance than pure f32.
    np.testing.assert_allclose(np.asarray(out), np.asarray(ref), rtol=2e-2, atol=2e-2)

    print("KERNEL_OK")
</pallas_src>

<mosaic_0001>
module attributes {stable_mosaic.version = 11 : i64} {
  func.func @_attn_rel_vec_kernel(%arg0: i32, %arg1: memref<1x8x32xbf16, #tpu.memory_space<vmem>>, %arg2: memref<32x32xbf16, #tpu.memory_space<vmem>>, %arg3: memref<32x32xbf16, #tpu.memory_space<vmem>>, %arg4: memref<32x32xbf16, #tpu.memory_space<vmem>>, %arg5: memref<8x8xbf16, #tpu.memory_space<vmem>>, %arg6: memref<1x32xf32, #tpu.memory_space<vmem>>, %arg7: memref<1x32xf32, #tpu.memory_space<vmem>>, %arg8: memref<1x8x32xf32, #tpu.memory_space<vmem>>) attributes {dimension_semantics = [#tpu.dimension_semantics<parallel>], iteration_bounds = array<i64: 2>, scalar_prefetch = 0 : i64, scratch_operands = 0 : i64, tpu.core_type = #tpu.core_type<tc>, window_params = [{transform_indices = @transform_0, window_bounds = array<i64: 1, 8, 32>}, {pipeline_mode = #tpu.pipeline_mode<synchronous>, transform_indices = @transform_1, window_bounds = array<i64: 32, 32>}, {pipeline_mode = #tpu.pipeline_mode<synchronous>, transform_indices = @transform_2, window_bounds = array<i64: 32, 32>}, {pipeline_mode = #tpu.pipeline_mode<synchronous>, transform_indices = @transform_3, window_bounds = array<i64: 32, 32>}, {pipeline_mode = #tpu.pipeline_mode<synchronous>, transform_indices = @transform_4, window_bounds = array<i64: 8, 8>}, {pipeline_mode = #tpu.pipeline_mode<synchronous>, transform_indices = @transform_5, window_bounds = array<i64: 1, 32>}, {pipeline_mode = #tpu.pipeline_mode<synchronous>, transform_indices = @transform_6, window_bounds = array<i64: 1, 32>}, {transform_indices = @transform_7, window_bounds = array<i64: 1, 8, 32>}]} {
    %c0 = arith.constant 0 : index
    %c0_0 = arith.constant 0 : index
    %c0_1 = arith.constant 0 : index
    %0 = vector.load %arg1[%c0, %c0_0, %c0_1] : memref<1x8x32xbf16, #tpu.memory_space<vmem>>, vector<1x8x32xbf16>
    %1 = vector.shape_cast %0 : vector<1x8x32xbf16> to vector<8x32xbf16>
    %c0_2 = arith.constant 0 : index
    %c0_3 = arith.constant 0 : index
    %2 = vector.load %arg2[%c0_2, %c0_3] : memref<32x32xbf16, #tpu.memory_space<vmem>>, vector<32x32xbf16>
    %cst = arith.constant dense<0.000000e+00> : vector<8x32xf32>
    %3 = tpu.matmul %1, %2, %cst {dimension_numbers = #tpu.dot_dimension_numbers<[1], [1], [0], [0], [0, 0, 1, 0], [], []>} : vector<8x32xbf16>, vector<32x32xbf16>, vector<8x32xf32> -> vector<8x32xf32>
    %c0_4 = arith.constant 0 : index
    %c0_5 = arith.constant 0 : index
    %4 = vector.load %arg3[%c0_4, %c0_5] : memref<32x32xbf16, #tpu.memory_space<vmem>>, vector<32x32xbf16>
    %cst_6 = arith.constant dense<0.000000e+00> : vector<8x32xf32>
    %5 = tpu.matmul %1, %4, %cst_6 {dimension_numbers = #tpu.dot_dimension_numbers<[1], [1], [0], [0], [0, 0, 1, 0], [], []>} : vector<8x32xbf16>, vector<32x32xbf16>, vector<8x32xf32> -> vector<8x32xf32>
    %c0_7 = arith.constant 0 : index
    %c0_8 = arith.constant 0 : index
    %6 = vector.load %arg4[%c0_7, %c0_8] : memref<32x32xbf16, #tpu.memory_space<vmem>>, vector<32x32xbf16>
    %cst_9 = arith.constant dense<0.000000e+00> : vector<8x32xf32>
    %7 = tpu.matmul %1, %6, %cst_9 {dimension_numbers = #tpu.dot_dimension_numbers<[1], [1], [0], [0], [0, 0, 1, 0], [], []>} : vector<8x32xbf16>, vector<32x32xbf16>, vector<8x32xf32> -> vector<8x32xf32>
    %cst_10 = arith.constant 0.176776692 : f32
    %8 = vector.broadcast %cst_10 : f32 to vector<8x32xf32>
    %9 = arith.mulf %3, %8 : vector<8x32xf32>
    %10 = arith.truncf %9 : vector<8x32xf32> to vector<8x32xbf16>
    %11 = arith.truncf %5 : vector<8x32xf32> to vector<8x32xbf16>
    %12 = arith.truncf %7 : vector<8x32xf32> to vector<8x32xbf16>
    %c0_11 = arith.constant 0 : index
    %c0_12 = arith.constant 0 : index
    %13 = vector.load %arg5[%c0_11, %c0_12] : memref<8x8xbf16, #tpu.memory_space<vmem>>, vector<8x8xbf16>
    %14 = vector.extract_strided_slice %10 {offsets = [0, 0], sizes = [8, 8], strides = [1, 1]} : vector<8x32xbf16> to vector<8x8xbf16>
    %15 = vector.extract_strided_slice %11 {offsets = [0, 0], sizes = [8, 8], strides = [1, 1]} : vector<8x32xbf16> to vector<8x8xbf16>
    %16 = vector.extract_strided_slice %12 {offsets = [0, 0], sizes = [8, 8], strides = [1, 1]} : vector<8x32xbf16> to vector<8x8xbf16>
    %cst_13 = arith.constant dense<0.000000e+00> : vector<8x8xf32>
    %17 = tpu.matmul %14, %13, %cst_13 {dimension_numbers = #tpu.dot_dimension_numbers<[1], [1], [0], [0], [0, 0, 1, 0], [], []>} : vector<8x8xbf16>, vector<8x8xbf16>, vector<8x8xf32> -> vector<8x8xf32>
    %cst_14 = arith.constant 0.000000e+00 : f32
    %18 = vector.broadcast %cst_14 : f32 to vector<8x1xf32>
    %19 = vector.extract_strided_slice %17 {offsets = [1, 0], sizes = [7, 8], strides = [1, 1]} : vector<8x8xf32> to vector<7x8xf32>
    %cst_15 = arith.constant 0.000000e+00 : f32
    %20 = vector.broadcast %cst_15 : f32 to vector<1x8xf32>
    %21 = tpu.concatenate %19, %20 in 0 : vector<7x8xf32>, vector<1x8xf32> -> vector<8x8xf32>
    %22 = tpu.concatenate %17, %18, %21 in 1 : vector<8x8xf32>, vector<8x1xf32>, vector<8x8xf32> -> vector<8x17xf32>
    %23 = vector.extract_strided_slice %22 {offsets = [0, 7], sizes = [1, 8], strides = [1, 1]} : vector<8x17xf32> to vector<1x8xf32>
    %24 = vector.extract_strided_slice %22 {offsets = [1, 6], sizes = [1, 8], strides = [1, 1]} : vector<8x17xf32> to vector<1x8xf32>
    %25 = vector.extract_strided_slice %22 {offsets = [2, 5], sizes = [1, 8], strides = [1, 1]} : vector<8x17xf32> to vector<1x8xf32>
    %26 = vector.extract_strided_slice %22 {offsets = [3, 4], sizes = [1, 8], strides = [1, 1]} : vector<8x17xf32> to vector<1x8xf32>
    %27 = vector.extract_strided_slice %22 {offsets = [4, 3], sizes = [1, 8], strides = [1, 1]} : vector<8x17xf32> to vector<1x8xf32>
    %28 = vector.extract_strided_slice %22 {offsets = [5, 2], sizes = [1, 8], strides = [1, 1]} : vector<8x17xf32> to vector<1x8xf32>
    %29 = vector.extract_strided_slice %22 {offsets = [6, 1], sizes = [1, 8], strides = [1, 1]} : vector<8x17xf32> to vector<1x8xf32>
    %30 = vector.extract_strided_slice %22 {offsets = [7, 0], sizes = [1, 8], strides = [1, 1]} : vector<8x17xf32> to vector<1x8xf32>
    %31 = tpu.concatenate %23, %24, %25, %26, %27, %28, %29, %30 in 0 : vector<1x8xf32>, vector<1x8xf32>, vector<1x8xf32>, vector<1x8xf32>, vector<1x8xf32>, vector<1x8xf32>, vector<1x8xf32>, vector<1x8xf32> -> vector<8x8xf32>
    %cst_16 = arith.constant dense<0.000000e+00> : vector<8x8xf32>
    %32 = tpu.matmul %14, %15, %cst_16 {dimension_numbers = #tpu.dot_dimension_numbers<[1], [1], [0], [0], [0, 0, 1, 0], [], []>} : vector<8x8xbf16>, vector<8x8xbf16>, vector<8x8xf32> -> vector<8x8xf32>
    %33 = arith.addf %32, %31 : vector<8x8xf32>
    %cst_17 = arith.constant dense<0xFF800000> : vector<8xf32>
    %34 = vector.multi_reduction <maximumf>, %33, %cst_17 [1] : vector<8x8xf32> to vector<8xf32>
    %35 = vector.shape_cast %34 : vector<8xf32> to vector<8x1xf32>
    %36 = vector.broadcast %35 : vector<8x1xf32> to vector<8x8xf32>
    %37 = arith.subf %33, %36 : vector<8x8xf32>
    %38 = math.exp %37 : vector<8x8xf32>
    %cst_18 = arith.constant dense<0.000000e+00> : vector<8xf32>
    %39 = vector.multi_reduction <add>, %38, %cst_18 [1] : vector<8x8xf32> to vector<8xf32>
    %40 = vector.shape_cast %39 : vector<8xf32> to vector<8x1xf32>
    %41 = tpu.reciprocal %40 {approx = true} : vector<8x1xf32> -> vector<8x1xf32>
    %42 = vector.broadcast %41 : vector<8x1xf32> to vector<8x8xf32>
    %43 = arith.mulf %38, %42 : vector<8x8xf32>
    %44 = arith.truncf %43 : vector<8x8xf32> to vector<8x8xbf16>
    %cst_19 = arith.constant dense<0.000000e+00> : vector<8x8xf32>
    %45 = tpu.matmul %44, %16, %cst_19 {dimension_numbers = #tpu.dot_dimension_numbers<[1], [0], [0], [1], [0, 0, 1, 1], [], []>} : vector<8x8xbf16>, vector<8x8xbf16>, vector<8x8xf32> -> vector<8x8xf32>
    %46 = vector.extract_strided_slice %10 {offsets = [0, 8], sizes = [8, 8], strides = [1, 1]} : vector<8x32xbf16> to vector<8x8xbf16>
    %47 = vector.extract_strided_slice %11 {offsets = [0, 8], sizes = [8, 8], strides = [1, 1]} : vector<8x32xbf16> to vector<8x8xbf16>
    %48 = vector.extract_strided_slice %12 {offsets = [0, 8], sizes = [8, 8], strides = [1, 1]} : vector<8x32xbf16> to vector<8x8xbf16>
    %cst_20 = arith.constant dense<0.000000e+00> : vector<8x8xf32>
    %49 = tpu.matmul %46, %13, %cst_20 {dimension_numbers = #tpu.dot_dimension_numbers<[1], [1], [0], [0], [0, 0, 1, 0], [], []>} : vector<8x8xbf16>, vector<8x8xbf16>, vector<8x8xf32> -> vector<8x8xf32>
    %cst_21 = arith.constant 0.000000e+00 : f32
    %50 = vector.broadcast %cst_21 : f32 to vector<8x1xf32>
    %51 = vector.extract_strided_slice %49 {offsets = [1, 0], sizes = [7, 8], strides = [1, 1]} : vector<8x8xf32> to vector<7x8xf32>
    %cst_22 = arith.constant 0.000000e+00 : f32
    %52 = vector.broadcast %cst_22 : f32 to vector<1x8xf32>
    %53 = tpu.concatenate %51, %52 in 0 : vector<7x8xf32>, vector<1x8xf32> -> vector<8x8xf32>
    %54 = tpu.concatenate %49, %50, %53 in 1 : vector<8x8xf32>, vector<8x1xf32>, vector<8x8xf32> -> vector<8x17xf32>
    %55 = vector.extract_strided_slice %54 {offsets = [0, 7], sizes = [1, 8], strides = [1, 1]} : vector<8x17xf32> to vector<1x8xf32>
    %56 = vector.extract_strided_slice %54 {offsets = [1, 6], sizes = [1, 8], strides = [1, 1]} : vector<8x17xf32> to vector<1x8xf32>
    %57 = vector.extract_strided_slice %54 {offsets = [2, 5], sizes = [1, 8], strides = [1, 1]} : vector<8x17xf32> to vector<1x8xf32>
    %58 = vector.extract_strided_slice %54 {offsets = [3, 4], sizes = [1, 8], strides = [1, 1]} : vector<8x17xf32> to vector<1x8xf32>
    %59 = vector.extract_strided_slice %54 {offsets = [4, 3], sizes = [1, 8], strides = [1, 1]} : vector<8x17xf32> to vector<1x8xf32>
    %60 = vector.extract_strided_slice %54 {offsets = [5, 2], sizes = [1, 8], strides = [1, 1]} : vector<8x17xf32> to vector<1x8xf32>
    %61 = vector.extract_strided_slice %54 {offsets = [6, 1], sizes = [1, 8], strides = [1, 1]} : vector<8x17xf32> to vector<1x8xf32>
    %62 = vector.extract_strided_slice %54 {offsets = [7, 0], sizes = [1, 8], strides = [1, 1]} : vector<8x17xf32> to vector<1x8xf32>
    %63 = tpu.concatenate %55, %56, %57, %58, %59, %60, %61, %62 in 0 : vector<1x8xf32>, vector<1x8xf32>, vector<1x8xf32>, vector<1x8xf32>, vector<1x8xf32>, vector<1x8xf32>, vector<1x8xf32>, vector<1x8xf32> -> vector<8x8xf32>
    %cst_23 = arith.constant dense<0.000000e+00> : vector<8x8xf32>
    %64 = tpu.matmul %46, %47, %cst_23 {dimension_numbers = #tpu.dot_dimension_numbers<[1], [1], [0], [0], [0, 0, 1, 0], [], []>} : vector<8x8xbf16>, vector<8x8xbf16>, vector<8x8xf32> -> vector<8x8xf32>
    %65 = arith.addf %64, %63 : vector<8x8xf32>
    %cst_24 = arith.constant dense<0xFF800000> : vector<8xf32>
    %66 = vector.multi_reduction <maximumf>, %65, %cst_24 [1] : vector<8x8xf32> to vector<8xf32>
    %67 = vector.shape_cast %66 : vector<8xf32> to vector<8x1xf32>
    %68 = vector.broadcast %67 : vector<8x1xf32> to vector<8x8xf32>
    %69 = arith.subf %65, %68 : vector<8x8xf32>
    %70 = math.exp %69 : vector<8x8xf32>
    %cst_25 = arith.constant dense<0.000000e+00> : vector<8xf32>
    %71 = vector.multi_reduction <add>, %70, %cst_25 [1] : vector<8x8xf32> to vector<8xf32>
    %72 = vector.shape_cast %71 : vector<8xf32> to vector<8x1xf32>
    %73 = tpu.reciprocal %72 {approx = true} : vector<8x1xf32> -> vector<8x1xf32>
    %74 = vector.broadcast %73 : vector<8x1xf32> to vector<8x8xf32>
    %75 = arith.mulf %70, %74 : vector<8x8xf32>
    %76 = arith.truncf %75 : vector<8x8xf32> to vector<8x8xbf16>
    %cst_26 = arith.constant dense<0.000000e+00> : vector<8x8xf32>
    %77 = tpu.matmul %76, %48, %cst_26 {dimension_numbers = #tpu.dot_dimension_numbers<[1], [0], [0], [1], [0, 0, 1, 1], [], []>} : vector<8x8xbf16>, vector<8x8xbf16>, vector<8x8xf32> -> vector<8x8xf32>
    %78 = vector.extract_strided_slice %10 {offsets = [0, 16], sizes = [8, 8], strides = [1, 1]} : vector<8x32xbf16> to vector<8x8xbf16>
    %79 = vector.extract_strided_slice %11 {offsets = [0, 16], sizes = [8, 8], strides = [1, 1]} : vector<8x32xbf16> to vector<8x8xbf16>
    %80 = vector.extract_strided_slice %12 {offsets = [0, 16], sizes = [8, 8], strides = [1, 1]} : vector<8x32xbf16> to vector<8x8xbf16>
    %cst_27 = arith.constant dense<0.000000e+00> : vector<8x8xf32>
    %81 = tpu.matmul %78, %13, %cst_27 {dimension_numbers = #tpu.dot_dimension_numbers<[1], [1], [0], [0], [0, 0, 1, 0], [], []>} : vector<8x8xbf16>, vector<8x8xbf16>, vector<8x8xf32> -> vector<8x8xf32>
    %cst_28 = arith.constant 0.000000e+00 : f32
    %82 = vector.broadcast %cst_28 : f32 to vector<8x1xf32>
    %83 = vector.extract_strided_slice %81 {offsets = [1, 0], sizes = [7, 8], strides = [1, 1]} : vector<8x8xf32> to vector<7x8xf32>
    %cst_29 = arith.constant 0.000000e+00 : f32
    %84 = vector.broadcast %cst_29 : f32 to vector<1x8xf32>
    %85 = tpu.concatenate %83, %84 in 0 : vector<7x8xf32>, vector<1x8xf32> -> vector<8x8xf32>
    %86 = tpu.concatenate %81, %82, %85 in 1 : vector<8x8xf32>, vector<8x1xf32>, vector<8x8xf32> -> vector<8x17xf32>
    %87 = vector.extract_strided_slice %86 {offsets = [0, 7], sizes = [1, 8], strides = [1, 1]} : vector<8x17xf32> to vector<1x8xf32>
    %88 = vector.extract_strided_slice %86 {offsets = [1, 6], sizes = [1, 8], strides = [1, 1]} : vector<8x17xf32> to vector<1x8xf32>
    %89 = vector.extract_strided_slice %86 {offsets = [2, 5], sizes = [1, 8], strides = [1, 1]} : vector<8x17xf32> to vector<1x8xf32>
    %90 = vector.extract_strided_slice %86 {offsets = [3, 4], sizes = [1, 8], strides = [1, 1]} : vector<8x17xf32> to vector<1x8xf32>
    %91 = vector.extract_strided_slice %86 {offsets = [4, 3], sizes = [1, 8], strides = [1, 1]} : vector<8x17xf32> to vector<1x8xf32>
    %92 = vector.extract_strided_slice %86 {offsets = [5, 2], sizes = [1, 8], strides = [1, 1]} : vector<8x17xf32> to vector<1x8xf32>
    %93 = vector.extract_strided_slice %86 {offsets = [6, 1], sizes = [1, 8], strides = [1, 1]} : vector<8x17xf32> to vector<1x8xf32>
    %94 = vector.extract_strided_slice %86 {offsets = [7, 0], sizes = [1, 8], strides = [1, 1]} : vector<8x17xf32> to vector<1x8xf32>
    %95 = tpu.concatenate %87, %88, %89, %90, %91, %92, %93, %94 in 0 : vector<1x8xf32>, vector<1x8xf32>, vector<1x8xf32>, vector<1x8xf32>, vector<1x8xf32>, vector<1x8xf32>, vector<1x8xf32>, vector<1x8xf32> -> vector<8x8xf32>
    %cst_30 = arith.constant dense<0.000000e+00> : vector<8x8xf32>
    %96 = tpu.matmul %78, %79, %cst_30 {dimension_numbers = #tpu.dot_dimension_numbers<[1], [1], [0], [0], [0, 0, 1, 0], [], []>} : vector<8x8xbf16>, vector<8x8xbf16>, vector<8x8xf32> -> vector<8x8xf32>
    %97 = arith.addf %96, %95 : vector<8x8xf32>
    %cst_31 = arith.constant dense<0xFF800000> : vector<8xf32>
    %98 = vector.multi_reduction <maximumf>, %97, %cst_31 [1] : vector<8x8xf32> to vector<8xf32>
    %99 = vector.shape_cast %98 : vector<8xf32> to vector<8x1xf32>
    %100 = vector.broadcast %99 : vector<8x1xf32> to vector<8x8xf32>
    %101 = arith.subf %97, %100 : vector<8x8xf32>
    %102 = math.exp %101 : vector<8x8xf32>
    %cst_32 = arith.constant dense<0.000000e+00> : vector<8xf32>
    %103 = vector.multi_reduction <add>, %102, %cst_32 [1] : vector<8x8xf32> to vector<8xf32>
    %104 = vector.shape_cast %103 : vector<8xf32> to vector<8x1xf32>
    %105 = tpu.reciprocal %104 {approx = true} : vector<8x1xf32> -> vector<8x1xf32>
    %106 = vector.broadcast %105 : vector<8x1xf32> to vector<8x8xf32>
    %107 = arith.mulf %102, %106 : vector<8x8xf32>
    %108 = arith.truncf %107 : vector<8x8xf32> to vector<8x8xbf16>
    %cst_33 = arith.constant dense<0.000000e+00> : vector<8x8xf32>
    %109 = tpu.matmul %108, %80, %cst_33 {dimension_numbers = #tpu.dot_dimension_numbers<[1], [0], [0], [1], [0, 0, 1, 1], [], []>} : vector<8x8xbf16>, vector<8x8xbf16>, vector<8x8xf32> -> vector<8x8xf32>
    %110 = vector.extract_strided_slice %10 {offsets = [0, 24], sizes = [8, 8], strides = [1, 1]} : vector<8x32xbf16> to vector<8x8xbf16>
    %111 = vector.extract_strided_slice %11 {offsets = [0, 24], sizes = [8, 8], strides = [1, 1]} : vector<8x32xbf16> to vector<8x8xbf16>
    %112 = vector.extract_strided_slice %12 {offsets = [0, 24], sizes = [8, 8], strides = [1, 1]} : vector<8x32xbf16> to vector<8x8xbf16>
    %cst_34 = arith.constant dense<0.000000e+00> : vector<8x8xf32>
    %113 = tpu.matmul %110, %13, %cst_34 {dimension_numbers = #tpu.dot_dimension_numbers<[1], [1], [0], [0], [0, 0, 1, 0], [], []>} : vector<8x8xbf16>, vector<8x8xbf16>, vector<8x8xf32> -> vector<8x8xf32>
    %cst_35 = arith.constant 0.000000e+00 : f32
    %114 = vector.broadcast %cst_35 : f32 to vector<8x1xf32>
    %115 = vector.extract_strided_slice %113 {offsets = [1, 0], sizes = [7, 8], strides = [1, 1]} : vector<8x8xf32> to vector<7x8xf32>
    %cst_36 = arith.constant 0.000000e+00 : f32
    %116 = vector.broadcast %cst_36 : f32 to vector<1x8xf32>
    %117 = tpu.concatenate %115, %116 in 0 : vector<7x8xf32>, vector<1x8xf32> -> vector<8x8xf32>
    %118 = tpu.concatenate %113, %114, %117 in 1 : vector<8x8xf32>, vector<8x1xf32>, vector<8x8xf32> -> vector<8x17xf32>
    %119 = vector.extract_strided_slice %118 {offsets = [0, 7], sizes = [1, 8], strides = [1, 1]} : vector<8x17xf32> to vector<1x8xf32>
    %120 = vector.extract_strided_slice %118 {offsets = [1, 6], sizes = [1, 8], strides = [1, 1]} : vector<8x17xf32> to vector<1x8xf32>
    %121 = vector.extract_strided_slice %118 {offsets = [2, 5], sizes = [1, 8], strides = [1, 1]} : vector<8x17xf32> to vector<1x8xf32>
    %122 = vector.extract_strided_slice %118 {offsets = [3, 4], sizes = [1, 8], strides = [1, 1]} : vector<8x17xf32> to vector<1x8xf32>
    %123 = vector.extract_strided_slice %118 {offsets = [4, 3], sizes = [1, 8], strides = [1, 1]} : vector<8x17xf32> to vector<1x8xf32>
    %124 = vector.extract_strided_slice %118 {offsets = [5, 2], sizes = [1, 8], strides = [1, 1]} : vector<8x17xf32> to vector<1x8xf32>
    %125 = vector.extract_strided_slice %118 {offsets = [6, 1], sizes = [1, 8], strides = [1, 1]} : vector<8x17xf32> to vector<1x8xf32>
    %126 = vector.extract_strided_slice %118 {offsets = [7, 0], sizes = [1, 8], strides = [1, 1]} : vector<8x17xf32> to vector<1x8xf32>
    %127 = tpu.concatenate %119, %120, %121, %122, %123, %124, %125, %126 in 0 : vector<1x8xf32>, vector<1x8xf32>, vector<1x8xf32>, vector<1x8xf32>, vector<1x8xf32>, vector<1x8xf32>, vector<1x8xf32>, vector<1x8xf32> -> vector<8x8xf32>
    %cst_37 = arith.constant dense<0.000000e+00> : vector<8x8xf32>
    %128 = tpu.matmul %110, %111, %cst_37 {dimension_numbers = #tpu.dot_dimension_numbers<[1], [1], [0], [0], [0, 0, 1, 0], [], []>} : vector<8x8xbf16>, vector<8x8xbf16>, vector<8x8xf32> -> vector<8x8xf32>
    %129 = arith.addf %128, %127 : vector<8x8xf32>
    %cst_38 = arith.constant dense<0xFF800000> : vector<8xf32>
    %130 = vector.multi_reduction <maximumf>, %129, %cst_38 [1] : vector<8x8xf32> to vector<8xf32>
    %131 = vector.shape_cast %130 : vector<8xf32> to vector<8x1xf32>
    %132 = vector.broadcast %131 : vector<8x1xf32> to vector<8x8xf32>
    %133 = arith.subf %129, %132 : vector<8x8xf32>
    %134 = math.exp %133 : vector<8x8xf32>
    %cst_39 = arith.constant dense<0.000000e+00> : vector<8xf32>
    %135 = vector.multi_reduction <add>, %134, %cst_39 [1] : vector<8x8xf32> to vector<8xf32>
    %136 = vector.shape_cast %135 : vector<8xf32> to vector<8x1xf32>
    %137 = tpu.reciprocal %136 {approx = true} : vector<8x1xf32> -> vector<8x1xf32>
    %138 = vector.broadcast %137 : vector<8x1xf32> to vector<8x8xf32>
    %139 = arith.mulf %134, %138 : vector<8x8xf32>
    %140 = arith.truncf %139 : vector<8x8xf32> to vector<8x8xbf16>
    %cst_40 = arith.constant dense<0.000000e+00> : vector<8x8xf32>
    %141 = tpu.matmul %140, %112, %cst_40 {dimension_numbers = #tpu.dot_dimension_numbers<[1], [0], [0], [1], [0, 0, 1, 1], [], []>} : vector<8x8xbf16>, vector<8x8xbf16>, vector<8x8xf32> -> vector<8x8xf32>
    %142 = tpu.concatenate %45, %77, %109, %141 in 1 : vector<8x8xf32>, vector<8x8xf32>, vector<8x8xf32>, vector<8x8xf32> -> vector<8x32xf32>
    %cst_41 = arith.constant dense<0.000000e+00> : vector<8xf32>
    %143 = vector.multi_reduction <add>, %142, %cst_41 [1] : vector<8x32xf32> to vector<8xf32>
    %144 = vector.shape_cast %143 : vector<8xf32> to vector<8x1xf32>
    %cst_42 = arith.constant 3.200000e+01 : f32
    %145 = vector.broadcast %cst_42 : f32 to vector<8x1xf32>
    %146 = arith.divf %144, %145 : vector<8x1xf32>
    %147 = vector.broadcast %146 : vector<8x1xf32> to vector<8x32xf32>
    %148 = arith.subf %142, %147 : vector<8x32xf32>
    %149 = arith.mulf %148, %148 : vector<8x32xf32>
    %cst_43 = arith.constant dense<0.000000e+00> : vector<8xf32>
    %150 = vector.multi_reduction <add>, %149, %cst_43 [1] : vector<8x32xf32> to vector<8xf32>
    %151 = vector.shape_cast %150 : vector<8xf32> to vector<8x1xf32>
    %cst_44 = arith.constant 3.200000e+01 : f32
    %152 = vector.broadcast %cst_44 : f32 to vector<8x1xf32>
    %153 = arith.divf %151, %152 : vector<8x1xf32>
    %154 = vector.broadcast %146 : vector<8x1xf32> to vector<8x32xf32>
    %155 = arith.subf %142, %154 : vector<8x32xf32>
    %cst_45 = arith.constant 9.99999974E-6 : f32
    %156 = vector.broadcast %cst_45 : f32 to vector<8x1xf32>
    %157 = arith.addf %153, %156 : vector<8x1xf32>
    %158 = math.rsqrt %157 : vector<8x1xf32>
    %159 = vector.broadcast %158 : vector<8x1xf32> to vector<8x32xf32>
    %160 = arith.mulf %155, %159 : vector<8x32xf32>
    %c0_46 = arith.constant 0 : index
    %c0_47 = arith.constant 0 : index
    %161 = vector.load %arg6[%c0_46, %c0_47] : memref<1x32xf32, #tpu.memory_space<vmem>>, vector<1x32xf32>
    %162 = vector.broadcast %161 : vector<1x32xf32> to vector<8x32xf32>
    %163 = arith.mulf %160, %162 : vector<8x32xf32>
    %c0_48 = arith.constant 0 : index
    %c0_49 = arith.constant 0 : index
    %164 = vector.load %arg7[%c0_48, %c0_49] : memref<1x32xf32, #tpu.memory_space<vmem>>, vector<1x32xf32>
    %165 = vector.broadcast %164 : vector<1x32xf32> to vector<8x32xf32>
    %166 = arith.addf %163, %165 : vector<8x32xf32>
    %c0_50 = arith.constant 0 : index
    %c0_51 = arith.constant 0 : index
    %c0_52 = arith.constant 0 : index
    %167 = vector.load %arg8[%c0_50, %c0_51, %c0_52] : memref<1x8x32xf32, #tpu.memory_space<vmem>>, vector<1x8x32xf32>
    %168 = vector.shape_cast %167 : vector<1x8x32xf32> to vector<8x32xf32>
    %169 = vector.shape_cast %166 : vector<8x32xf32> to vector<1x8x32xf32>
    tpu.vector_store %arg8[%c0_50, %c0_51, %c0_52], %169 {strides = array<i32>} : memref<1x8x32xf32, #tpu.memory_space<vmem>>, vector<1x8x32xf32>,
    return
  }
  func.func @transform_0(%arg0: i32) -> (i32, i32, i32) {
    %c0_i32 = arith.constant 0 : i32
    %c0_i32_0 = arith.constant 0 : i32
    %c0_i32_1 = arith.constant 0 : i32
    return %arg0, %c0_i32, %c0_i32_0 : i32, i32, i32
  }
  func.func @transform_1(%arg0: i32) -> (i32, i32) {
    %c0_i32 = arith.constant 0 : i32
    %c0_i32_0 = arith.constant 0 : i32
    %c0_i32_1 = arith.constant 0 : i32
    return %c0_i32, %c0_i32_0 : i32, i32
  }
  func.func @transform_2(%arg0: i32) -> (i32, i32) {
    %c0_i32 = arith.constant 0 : i32
    %c0_i32_0 = arith.constant 0 : i32
    %c0_i32_1 = arith.constant 0 : i32
    return %c0_i32, %c0_i32_0 : i32, i32
  }
  func.func @transform_3(%arg0: i32) -> (i32, i32) {
    %c0_i32 = arith.constant 0 : i32
    %c0_i32_0 = arith.constant 0 : i32
    %c0_i32_1 = arith.constant 0 : i32
    return %c0_i32, %c0_i32_0 : i32, i32
  }
  func.func @transform_4(%arg0: i32) -> (i32, i32) {
    %c0_i32 = arith.constant 0 : i32
    %c0_i32_0 = arith.constant 0 : i32
    %c0_i32_1 = arith.constant 0 : i32
    return %c0_i32, %c0_i32_0 : i32, i32
  }
  func.func @transform_5(%arg0: i32) -> (i32, i32) {
    %c0_i32 = arith.constant 0 : i32
    %c0_i32_0 = arith.constant 0 : i32
    %c0_i32_1 = arith.constant 0 : i32
    return %c0_i32, %c0_i32_0 : i32, i32
  }
  func.func @transform_6(%arg0: i32) -> (i32, i32) {
    %c0_i32 = arith.constant 0 : i32
    %c0_i32_0 = arith.constant 0 : i32
    %c0_i32_1 = arith.constant 0 : i32
    return %c0_i32, %c0_i32_0 : i32, i32
  }
  func.func @transform_7(%arg0: i32) -> (i32, i32, i32) {
    %c0_i32 = arith.constant 0 : i32
    %c0_i32_0 = arith.constant 0 : i32
    %c0_i32_1 = arith.constant 0 : i32
    return %arg0, %c0_i32, %c0_i32_0 : i32, i32, i32
  }
}

</mosaic_0001>

<llo_original>
// kernel: attention_rel_vec.1
$region0: #{attention_rel_vec.1}
  #allocation0 [shape = 'u32[]', space=smem, size = 0x4, offset = 0x4, fixed_abs, tag = 'smem constant byte address 0x4 - core index']
  #allocation1 [shape = 'u32[144,128]{1,0:T(1,128)}', space=vmem, size = 0x12000, scoped, tag = 'internal scratch']
  %s0 = inlined_call_operand.vmem [shape: bf16[2,8,32], index: 0, kind: input, shape index: {}]
  %s1 = inlined_call_operand.vmem [shape: bf16[32,32], index: 1, kind: input, shape index: {}]
  %s2 = inlined_call_operand.hbm [shape: bf16[32,32], index: 2, kind: input, shape index: {}]
  %s3 = inlined_call_operand.hbm [shape: bf16[32,32], index: 3, kind: input, shape index: {}]
  %s4 = inlined_call_operand.vmem [shape: bf16[8,8], index: 4, kind: input, shape index: {}]
  %s5 = inlined_call_operand.vmem [shape: f32[1,32], index: 5, kind: input, shape index: {}]
  %s6 = inlined_call_operand.vmem [shape: f32[1,32], index: 6, kind: input, shape index: {}]
  %s7 = inlined_call_operand.hbm [shape: f32[2,8,32], index: 7, kind: output, shape index: {}]
  %s8 = sld [smem:[#allocation0]]
  $region69: #{attention_rel_vec.1} parent=0
    _
  %s10 = ssub.s32 1, %s8
  %s11 = scalar_select 0, %s10, %s8
  $region1: #{attention_rel_vec.1} parent=0
    #allocation2 [shape = 'u8[8192]{0}', space=vmem, size = 0x2000, scoped, tag = 'input window, operand 2, single buffered']
    #allocation3 [shape = 's32[2]{0}', space=sflag, size = 0x8, scoped, tag = 'scoped memory for attention_rel_vec.1']
    #allocation4 [shape = 's32[2]{0}', space=sflag, size = 0x8, scoped, tag = 'scoped memory for attention_rel_vec.1']
    #allocation5 [shape = 'u8[8192]{0}', space=vmem, size = 0x2000, scoped, tag = 'input window, operand 3, single buffered']
    #allocation6 [shape = 's32[1]{0}', space=sflag, size = 0x4, scoped, tag = 'scoped memory for attention_rel_vec.1']
    #allocation7 [shape = 'u8[8192]{0}', space=vmem, size = 0x2000, scoped, tag = 'output window, operand 0']
    %12 = vsyncpa [#allocation3], 0
    %13 = vsyncpa [#allocation6], 0
    %14 = vsyncpa [#allocation4], 0
    %s15 = scalar_lea.sflag [#allocation4], 1
    %16 = vsyncpa %s15, 0
    loop: start=0, step=1, limit=4
    $region2: #{attention_rel_vec.1} parent=1 // loop_pre_header
      _
    $region3: #{attention_rel_vec.1} parent=1 // loop_header
      %s18 = sphi 0, %s22
      %p19 = scmp.ge.s32.totalorder %s18, 4
      %s28 = sphi 0, %s30
      %s31 = sphi 0, %s28
      %s32 = sphi 0, %s31
      %s48 = sphi 0, %s32
      %s52 = sphi 0, %s52
      %s54 = sphi 0, %s52
      %s55 = sphi 0, %s54
      %s69 = sphi 0, %s55
      %s73 = sphi 0, %s73
      %s75 = sphi 0, %s73
      %s76 = sphi 0, %s75
      %s90 = sphi 0, %s76
      %s94 = sphi 0, %s94
      %s96 = sphi 0, %s94
      %s97 = sphi 0, %s96
      %s111 = sphi 0, %s97
      %s115 = sphi 0, %s115
      %s117 = sphi 0, %s115
      %s118 = sphi 0, %s117
      %s132 = sphi 0, %s118
      %s136 = sphi 0, %s136
      %s138 = sphi 0, %s136
      %s139 = sphi 0, %s138
      %s153 = sphi 0, %s139
      %s157 = sphi 0, %s157
      %s159 = sphi 0, %s157
      %s160 = sphi 0, %s159
      %s174 = sphi 0, %s160
      %s180 = sphi 0, %s182
      %s183 = sphi 0, %s180
      %s184 = sphi 0, %s183
      %s200 = sphi 0, %s184
    $region4: #{attention_rel_vec.1} parent=1 // loop_header_branch
      %21 = sbr.rel (%p19) target = $region8
    $region5: #{attention_rel_vec.1} parent=1 // loop_body
      %s23 = ssub.s32 %s18, 1
      %s24 = ssub.s32 %s18, 2
      %s25 = sadd.s32 %s18, 1
      %s26 = ssub.s32 %s18, %s25
      %p27 = scmp.eq.s32.totalorder %s26, 0
      %s29 = sadd.s32 %s28, 1
      %s30 = scalar_select %p27, %s28, %s29
      %p33 = pneg %p27
      %p34 = scmp.eq.s32.totalorder %s18, 1
      %p35 = por %p33, %p34
      %p36 = scmp.ne.s32.totalorder %s28, %s31
      %p37 = scmp.eq.s32.totalorder %s18, 0
      %p38 = por %p36, %p37
      %p39 = scmp.ne.s32.totalorder %s28, %s31
      %p40 = scmp.eq.s32.totalorder %s23, 1
      %p41 = por %p39, %p40
      %p42 = scmp.ne.s32.totalorder %s31, %s32
      %p43 = scmp.eq.s32.totalorder %s23, 0
      %p44 = por %p42, %p43
      %p45 = scmp.ne.s32.totalorder %s31, %s32
      %p46 = scmp.eq.s32.totalorder %s24, 1
      %p47 = por %p45, %p46
      %p49 = scmp.ne.s32.totalorder %s32, %s48
      %p50 = scmp.eq.s32.totalorder %s24, 0
      %p51 = por %p49, %p50
      %s53 = sadd.s32 %s52, 1
      %p56 = scmp.eq.s32.totalorder %s18, 1
      %p57 = scmp.ne.s32.totalorder %s52, %s54
      %p58 = scmp.eq.s32.totalorder %s18, 0
      %p59 = por %p57, %p58
      %p60 = scmp.ne.s32.totalorder %s52, %s54
      %p61 = scmp.eq.s32.totalorder %s23, 1
      %p62 = por %p60, %p61
      %p63 = scmp.ne.s32.totalorder %s54, %s55
      %p64 = scmp.eq.s32.totalorder %s23, 0
      %p65 = por %p63, %p64
      %p66 = scmp.ne.s32.totalorder %s54, %s55
      %p67 = scmp.eq.s32.totalorder %s24, 1
      %p68 = por %p66, %p67
      %p70 = scmp.ne.s32.totalorder %s55, %s69
      %p71 = scmp.eq.s32.totalorder %s24, 0
      %p72 = por %p70, %p71
      %s74 = sadd.s32 %s73, 1
      %p77 = scmp.eq.s32.totalorder %s18, 1
      %p78 = scmp.ne.s32.totalorder %s73, %s75
      %p79 = scmp.eq.s32.totalorder %s18, 0
      %p80 = por %p78, %p79
      %p81 = scmp.ne.s32.totalorder %s73, %s75
      %p82 = scmp.eq.s32.totalorder %s23, 1
      %p83 = por %p81, %p82
      %p84 = scmp.ne.s32.totalorder %s75, %s76
      %p85 = scmp.eq.s32.totalorder %s23, 0
      %p86 = por %p84, %p85
      %p87 = scmp.ne.s32.totalorder %s75, %s76
      %p88 = scmp.eq.s32.totalorder %s24, 1
      %p89 = por %p87, %p88
      %p91 = scmp.ne.s32.totalorder %s76, %s90
      %p92 = scmp.eq.s32.totalorder %s24, 0
      %p93 = por %p91, %p92
      %s95 = sadd.s32 %s94, 1
      %p98 = scmp.eq.s32.totalorder %s18, 1
      %p99 = scmp.ne.s32.totalorder %s94, %s96
      %p100 = scmp.eq.s32.totalorder %s18, 0
      %p101 = por %p99, %p100
      %p102 = scmp.ne.s32.totalorder %s94, %s96
      %p103 = scmp.eq.s32.totalorder %s23, 1
      %p104 = por %p102, %p103
      %p105 = scmp.ne.s32.totalorder %s96, %s97
      %p106 = scmp.eq.s32.totalorder %s23, 0
      %p107 = por %p105, %p106
      %p108 = scmp.ne.s32.totalorder %s96, %s97
      %p109 = scmp.eq.s32.totalorder %s24, 1
      %p110 = por %p108, %p109
      %p112 = scmp.ne.s32.totalorder %s97, %s111
      %p113 = scmp.eq.s32.totalorder %s24, 0
      %p114 = por %p112, %p113
      %s116 = sadd.s32 %s115, 1
      %p119 = scmp.eq.s32.totalorder %s18, 1
      %p120 = scmp.ne.s32.totalorder %s115, %s117
      %p121 = scmp.eq.s32.totalorder %s18, 0
      %p122 = por %p120, %p121
      %p123 = scmp.ne.s32.totalorder %s115, %s117
      %p124 = scmp.eq.s32.totalorder %s23, 1
      %p125 = por %p123, %p124
      %p126 = scmp.ne.s32.totalorder %s117, %s118
      %p127 = scmp.eq.s32.totalorder %s23, 0
      %p128 = por %p126, %p127
      %p129 = scmp.ne.s32.totalorder %s117, %s118
      %p130 = scmp.eq.s32.totalorder %s24, 1
      %p131 = por %p129, %p130
      %p133 = scmp.ne.s32.totalorder %s118, %s132
      %p134 = scmp.eq.s32.totalorder %s24, 0
      %p135 = por %p133, %p134
      %s137 = sadd.s32 %s136, 1
      %p140 = scmp.eq.s32.totalorder %s18, 1
      %p141 = scmp.ne.s32.totalorder %s136, %s138
      %p142 = scmp.eq.s32.totalorder %s18, 0
      %p143 = por %p141, %p142
      %p144 = scmp.ne.s32.totalorder %s136, %s138
      %p145 = scmp.eq.s32.totalorder %s23, 1
      %p146 = por %p144, %p145
      %p147 = scmp.ne.s32.totalorder %s138, %s139
      %p148 = scmp.eq.s32.totalorder %s23, 0
      %p149 = por %p147, %p148
      %p150 = scmp.ne.s32.totalorder %s138, %s139
      %p151 = scmp.eq.s32.totalorder %s24, 1
      %p152 = por %p150, %p151
      %p154 = scmp.ne.s32.totalorder %s139, %s153
      %p155 = scmp.eq.s32.totalorder %s24, 0
      %p156 = por %p154, %p155
      %s158 = sadd.s32 %s157, 1
      %p161 = scmp.eq.s32.totalorder %s18, 1
      %p162 = scmp.ne.s32.totalorder %s157, %s159
      %p163 = scmp.eq.s32.totalorder %s18, 0
      %p164 = por %p162, %p163
      %p165 = scmp.ne.s32.totalorder %s157, %s159
      %p166 = scmp.eq.s32.totalorder %s23, 1
      %p167 = por %p165, %p166
      %p168 = scmp.ne.s32.totalorder %s159, %s160
      %p169 = scmp.eq.s32.totalorder %s23, 0
      %p170 = por %p168, %p169
      %p171 = scmp.ne.s32.totalorder %s159, %s160
      %p172 = scmp.eq.s32.totalorder %s24, 1
      %p173 = por %p171, %p172
      %p175 = scmp.ne.s32.totalorder %s160, %s174
      %p176 = scmp.eq.s32.totalorder %s24, 0
      %p177 = por %p175, %p176
      %s178 = ssub.s32 %s18, %s25
      %p179 = scmp.eq.s32.totalorder %s178, 0
      %s181 = sadd.s32 %s180, 1
      %s182 = scalar_select %p179, %s180, %s181
      %p185 = pneg %p179
      %p186 = scmp.eq.s32.totalorder %s18, 1
      %p187 = por %p185, %p186
      %p188 = scmp.ne.s32.totalorder %s180, %s183
      %p189 = scmp.eq.s32.totalorder %s18, 0
      %p190 = por %p188, %p189
      %p191 = scmp.ne.s32.totalorder %s180, %s183
      %p192 = scmp.eq.s32.totalorder %s23, 1
      %p193 = por %p191, %p192
      %p194 = scmp.ne.s32.totalorder %s183, %s184
      %p195 = scmp.eq.s32.totalorder %s23, 0
      %p196 = por %p194, %p195
      %p197 = scmp.ne.s32.totalorder %s183, %s184
      %p198 = scmp.eq.s32.totalorder %s24, 1
      %p199 = por %p197, %p198
      %p201 = scmp.ne.s32.totalorder %s184, %s200
      %p202 = scmp.eq.s32.totalorder %s24, 0
      %p203 = por %p201, %p202
      %p204 = scmp.le.s32.totalorder 1, %s18
      %p205 = scmp.lt.s32.totalorder %s18, 3
      %p206 = pnand %p204, %p205
      %p207 = pneg %p206
      // Predicated region
      $region9: #{attention_rel_vec.1} parent=5 // pred_check
        _
      $region10: #{attention_rel_vec.1} parent=5 // pred_check_branch
        %209 = sbr.rel (%p206) target = $region12
      $region11: #{attention_rel_vec.1} parent=5 // pred_region
        %s210 = ssub.s32 %s18, 1
        // Predicated region
        $region13: #{attention_rel_vec.1} parent=11 // pred_check
          %p211 = pneg %p65
        $region14: #{attention_rel_vec.1} parent=11 // pred_check_branch
          %213 = sbr.rel (%p211) target = $region16
        $region15: #{attention_rel_vec.1} parent=11 // pred_region
          _
        $region16: #{attention_rel_vec.1} parent=11 // pred_fallthru
          _
        // Predicated region
        $region17: #{attention_rel_vec.1} parent=11 // pred_check
          %p214 = pneg %p86
        $region18: #{attention_rel_vec.1} parent=11 // pred_check_branch
          %216 = sbr.rel (%p214) target = $region20
        $region19: #{attention_rel_vec.1} parent=11 // pred_region
          %s218 = ssub.s32 256, 256
          %219 = vsyncadd [#allocation3], %s218
          %s220 = sshll.u32 [#allocation2], 4
          %s221 = int_to_ptr.vmem [resolvable:$true] %s220
          %226 = dma.hbm_to_vmem [thread:$0]  %s2, 256, %s221, [#allocation3], 64, 64, 4
        $region20: #{attention_rel_vec.1} parent=11 // pred_fallthru
          _
        // Predicated region
        $region21: #{attention_rel_vec.1} parent=11 // pred_check
          %p227 = pneg %p107
        $region22: #{attention_rel_vec.1} parent=11 // pred_check_branch
          %229 = sbr.rel (%p227) target = $region24
        $region23: #{attention_rel_vec.1} parent=11 // pred_region
          %s231 = ssub.s32 256, 256
          %232 = vsyncadd [#allocation6], %s231
          %s233 = sshll.u32 [#allocation5], 4
          %s234 = int_to_ptr.vmem [resolvable:$true] %s233
          %239 = dma.hbm_to_vmem [thread:$0]  %s3, 256, %s234, [#allocation6], 64, 64, 4
        $region24: #{attention_rel_vec.1} parent=11 // pred_fallthru
          _
        // Predicated region
        $region25: #{attention_rel_vec.1} parent=11 // pred_check
          %p240 = pneg %p128
        $region26: #{attention_rel_vec.1} parent=11 // pred_check_branch
          %242 = sbr.rel (%p240) target = $region28
        $region27: #{attention_rel_vec.1} parent=11 // pred_region
          _
        $region28: #{attention_rel_vec.1} parent=11 // pred_fallthru
          _
        // Predicated region
        $region29: #{attention_rel_vec.1} parent=11 // pred_check
          %p243 = pneg %p149
        $region30: #{attention_rel_vec.1} parent=11 // pred_check_branch
          %245 = sbr.rel (%p243) target = $region32
        $region31: #{attention_rel_vec.1} parent=11 // pred_region
          _
        $region32: #{attention_rel_vec.1} parent=11 // pred_fallthru
          _
        // Predicated region
        $region33: #{attention_rel_vec.1} parent=11 // pred_check
          %p246 = pneg %p170
        $region34: #{attention_rel_vec.1} parent=11 // pred_check_branch
          %248 = sbr.rel (%p246) target = $region36
        $region35: #{attention_rel_vec.1} parent=11 // pred_region
          _
        $region36: #{attention_rel_vec.1} parent=11 // pred_fallthru
          _
      $region12: #{attention_rel_vec.1} parent=5 // pred_fallthru
        _
      %p249 = scmp.lt.s32.totalorder %s18, 2
      // Predicated region
      $region37: #{attention_rel_vec.1} parent=5 // pred_check
        %p250 = pneg %p249
      $region38: #{attention_rel_vec.1} parent=5 // pred_check_branch
        %252 = sbr.rel (%p250) target = $region40
      $region39: #{attention_rel_vec.1} parent=5 // pred_region
        // Predicated region
        $region41: #{attention_rel_vec.1} parent=39 // pred_check
          %p253 = pneg %p38
        $region42: #{attention_rel_vec.1} parent=39 // pred_check_branch
          %255 = sbr.rel (%p253) target = $region44
        $region43: #{attention_rel_vec.1} parent=39 // pred_region
          %p256 = scmp.lt.s32.totalorder %s18, 1
          %s257 = scalar_select %p256, %s18, 1
          %s258 = smul.addr %s257, 4
          %s259 = scalar_lea.vmem %s0, %s258
        $region44: #{attention_rel_vec.1} parent=39 // pred_fallthru
          _
      $region40: #{attention_rel_vec.1} parent=5 // pred_fallthru
        _
      %p260 = scmp.le.s32.totalorder 1, %s18
      %p261 = scmp.lt.s32.totalorder %s18, 3
      %p262 = pnand %p260, %p261
      %p263 = pneg %p262
      // Predicated region
      $region45: #{attention_rel_vec.1} parent=5 // pred_check
        _
      $region46: #{attention_rel_vec.1} parent=5 // pred_check_branch
        %265 = sbr.rel (%p262) target = $region48
      $region47: #{attention_rel_vec.1} parent=5 // pred_region
        %s266 = ssub.s32 %s18, 1
        // Predicated region
        $region49: #{attention_rel_vec.1} parent=47 // pred_check
          %p267 = pneg %p86
        $region50: #{attention_rel_vec.1} parent=47 // pred_check_branch
          %269 = sbr.rel (%p267) target = $region52
        $region51: #{attention_rel_vec.1} parent=47 // pred_region
          %270 = dma.done [#allocation3], 256
        $region52: #{attention_rel_vec.1} parent=47 // pred_fallthru
          _
        // Predicated region
        $region53: #{attention_rel_vec.1} parent=47 // pred_check
          %p271 = pneg %p107
        $region54: #{attention_rel_vec.1} parent=47 // pred_check_branch
          %273 = sbr.rel (%p271) target = $region56
        $region55: #{attention_rel_vec.1} parent=47 // pred_region
          %274 = dma.done [#allocation6], 256
        $region56: #{attention_rel_vec.1} parent=47 // pred_fallthru
          _
        %p275 = scmp.lt.s32.totalorder %s23, 1
        %s276 = scalar_select %p275, %s23, 1
        %s277 = smul.addr %s276, 4
        %s278 = scalar_lea.vmem %s0, %s277
        %p279 = pneg %p44
        %p280 = pneg %p41
        %p281 = pneg %p65
        %p282 = pneg %p62
        %p283 = pneg %p86
        %p284 = pneg %p83
        %p285 = pneg %p107
        %p286 = pneg %p104
        %p287 = pneg %p128
        %p288 = pneg %p125
        %p289 = pneg %p149
        %p290 = pneg %p146
        %p291 = pneg %p170
        %p292 = pneg %p167
        %p293 = pneg %p196
        %p294 = pneg %p193
        %s295 = sand.u32 %s183, 1
        %s296 = scalar_lea.sflag [#allocation4], %s295
        %s297 = sand.u32 %s183, 1
        %s298 = smul.addr %s297, 8
        %s299 = scalar_lea.vmem [#allocation7], %s298
        %p300 = scmp.lt.s32.totalorder %s23, 1
        %s301 = scalar_select %p300, %s23, 1
        %s302 = smul.addr %s301, 4
        %s303 = scalar_lea.vmem %s0, %s302
        %v305 = vld [vmem:[%s303] sm:$0xf]
        %v306 = vld [vmem:[%s1] sm:$0xf]
        %v307 = vld [vmem:[%s1 + $0x4] sm:$0xf]
        %v308 = vld [vmem:[%s1 + $0x8] sm:$0xf]
        %v309 = vld [vmem:[%s1 + $0xc] sm:$0xf]
        %v314 = vunpack.c.l.b16 %v306
        %v315 = vunpack.c.l.b16 %v307
        %v316 = vunpack.c.l.b16 %v308
        %v317 = vunpack.c.l.b16 %v309
        %v318 = vpack.c.b16 %v315, %v314
        %v319 = vpack.c.b16 %v317, %v316
        %vm320 = vcmask 261120
        %v322 = vsel %vm320, %v305, 0
        %v325 = vsel %vm320, %v318, 0
        %v328 = vsel %vm320, %v319, 0
        %330 = vmatprep.subr.bf16.mxu0 0
        %331 = vmatpush1.bf16.xpose.msra.mxu0 0
        %332 = vmatprep.subr.bf16.mxu0 0
        %333 = vmatpush1.bf16.xpose.msra.mxu0 0
        %334 = vmatprep.subr.bf16.mxu0 0
        %335 = vmatpush1.bf16.xpose.msra.mxu0 0
        %336 = vmatprep.subr.bf16.mxu0 0
        %337 = vmatpush1.bf16.xpose.msra.mxu0 0
        %338 = vmatprep.subr.bf16.mxu0 0
        %339 = vmatpush1.bf16.xpose.msra.mxu0 0
        %340 = vmatprep.subr.bf16.mxu0 0
        %341 = vmatpush1.bf16.xpose.msra.mxu0 0
        %342 = vmatprep.subr.bf16.mxu0 0
        %343 = vmatpush1.bf16.xpose.msra.mxu0 %v328
        %344 = vmatprep.subr.bf16.mxu0 0
        %345 = vmatpush1.bf16.xpose.msra.mxu0 %v325
        %346 = vmatprep.subr.bf16.mxu0 0
        %347 = vmatpush2.bf16.xpose.msra.mxu0 0
        %348 = vmatprep.subr.bf16.mxu0 0
        %349 = vmatpush2.bf16.xpose.msra.mxu0 0
        %350 = vmatprep.subr.bf16.mxu0 0
        %351 = vmatpush2.bf16.xpose.msra.mxu0 0
        %352 = vmatprep.subr.bf16.mxu0 0
        %353 = vmatpush2.bf16.xpose.msra.mxu0 0
        %354 = vmatprep.subr.bf16.mxu0 0
        %355 = vmatpush2.bf16.xpose.msra.mxu0 0
        %356 = vmatprep.subr.bf16.mxu0 0
        %357 = vmatpush2.bf16.xpose.msra.mxu0 0
        %358 = vmatprep.subr.bf16.mxu0 0
        %359 = vmatpush2.bf16.xpose.msra.mxu0 0
        %360 = vmatprep.subr.bf16.mxu0 0
        %361 = vmatpush2.bf16.xpose.msra.mxu0 0
        %362 = vmatprep.mubr.bf16.mxu0 0
        %363 = vmatmul.mubr.bf16.gmra.mxu0 %v322
        %v364 = vpop.f32.mrf.mxu0
        %v365 = vadd.f32 0.0, %v364
        %v366 = vpop.f32.mrf.mxu0
        %v367 = vpop.f32.mrf.mxu0
        %v368 = vpop.f32.mrf.mxu0
        %369 = vdwg.mxu0
        %v370 = vld [vmem:[#allocation2] sm:$0xf]
        %v371 = vld [vmem:[#allocation2 + $0x4] sm:$0xf]
        %v372 = vld [vmem:[#allocation2 + $0x8] sm:$0xf]
        %v373 = vld [vmem:[#allocation2 + $0xc] sm:$0xf]
        %v378 = vunpack.c.l.b16 %v370
        %v379 = vunpack.c.l.b16 %v371
        %v380 = vunpack.c.l.b16 %v372
        %v381 = vunpack.c.l.b16 %v373
        %v382 = vpack.c.b16 %v379, %v378
        %v383 = vpack.c.b16 %v381, %v380
        %v385 = vsel %vm320, %v382, 0
        %v388 = vsel %vm320, %v383, 0
        %390 = vmatprep.subr.bf16.mxu0 0
        %391 = vmatpush1.bf16.xpose.msra.mxu0 0
        %392 = vmatprep.subr.bf16.mxu0 0
        %393 = vmatpush1.bf16.xpose.msra.mxu0 0
        %394 = vmatprep.subr.bf16.mxu0 0
        %395 = vmatpush1.bf16.xpose.msra.mxu0 0
        %396 = vmatprep.subr.bf16.mxu0 0
        %397 = vmatpush1.bf16.xpose.msra.mxu0 0
        %398 = vmatprep.subr.bf16.mxu0 0
        %399 = vmatpush1.bf16.xpose.msra.mxu0 0
        %400 = vmatprep.subr.bf16.mxu0 0
        %401 = vmatpush1.bf16.xpose.msra.mxu0 0
        %402 = vmatprep.subr.bf16.mxu0 0
        %403 = vmatpush1.bf16.xpose.msra.mxu0 %v388
        %404 = vmatprep.subr.bf16.mxu0 0
        %405 = vmatpush1.bf16.xpose.msra.mxu0 %v385
        %406 = vmatprep.subr.bf16.mxu0 0
        %407 = vmatpush2.bf16.xpose.msra.mxu0 0
        %408 = vmatprep.subr.bf16.mxu0 0
        %409 = vmatpush2.bf16.xpose.msra.mxu0 0
        %410 = vmatprep.subr.bf16.mxu0 0
        %411 = vmatpush2.bf16.xpose.msra.mxu0 0
        %412 = vmatprep.subr.bf16.mxu0 0
        %413 = vmatpush2.bf16.xpose.msra.mxu0 0
        %414 = vmatprep.subr.bf16.mxu0 0
        %415 = vmatpush2.bf16.xpose.msra.mxu0 0
        %416 = vmatprep.subr.bf16.mxu0 0
        %417 = vmatpush2.bf16.xpose.msra.mxu0 0
        %418 = vmatprep.subr.bf16.mxu0 0
        %419 = vmatpush2.bf16.xpose.msra.mxu0 0
        %420 = vmatprep.subr.bf16.mxu0 0
        %421 = vmatpush2.bf16.xpose.msra.mxu0 0
        %422 = vmatprep.mubr.bf16.mxu0 0
        %423 = vmatmul.mubr.bf16.gmra.mxu0 %v322
        %v424 = vpop.f32.mrf.mxu0
        %v425 = vadd.f32 0.0, %v424
        %v426 = vpop.f32.mrf.mxu0
        %v427 = vpop.f32.mrf.mxu0
        %v428 = vpop.f32.mrf.mxu0
        %429 = vdwg.mxu0
        %v430 = vld [vmem:[#allocation5] sm:$0xf]
        %v431 = vld [vmem:[#allocation5 + $0x4] sm:$0xf]
        %v432 = vld [vmem:[#allocation5 + $0x8] sm:$0xf]
        %v433 = vld [vmem:[#allocation5 + $0xc] sm:$0xf]
        %v438 = vunpack.c.l.b16 %v430
        %v439 = vunpack.c.l.b16 %v431
        %v440 = vunpack.c.l.b16 %v432
        %v441 = vunpack.c.l.b16 %v433
        %v442 = vpack.c.b16 %v439, %v438
        %v443 = vpack.c.b16 %v441, %v440
        %v445 = vsel %vm320, %v442, 0
        %v448 = vsel %vm320, %v443, 0
        %450 = vmatprep.subr.bf16.mxu0 0
        %451 = vmatpush1.bf16.xpose.msra.mxu0 0
        %452 = vmatprep.subr.bf16.mxu0 0
        %453 = vmatpush1.bf16.xpose.msra.mxu0 0
        %454 = vmatprep.subr.bf16.mxu0 0
        %455 = vmatpush1.bf16.xpose.msra.mxu0 0
        %456 = vmatprep.subr.bf16.mxu0 0
        %457 = vmatpush1.bf16.xpose.msra.mxu0 0
        %458 = vmatprep.subr.bf16.mxu0 0
        %459 = vmatpush1.bf16.xpose.msra.mxu0 0
        %460 = vmatprep.subr.bf16.mxu0 0
        %461 = vmatpush1.bf16.xpose.msra.mxu0 0
        %462 = vmatprep.subr.bf16.mxu0 0
        %463 = vmatpush1.bf16.xpose.msra.mxu0 %v448
        %464 = vmatprep.subr.bf16.mxu0 0
        %465 = vmatpush1.bf16.xpose.msra.mxu0 %v445
        %466 = vmatprep.subr.bf16.mxu0 0
        %467 = vmatpush2.bf16.xpose.msra.mxu0 0
        %468 = vmatprep.subr.bf16.mxu0 0
        %469 = vmatpush2.bf16.xpose.msra.mxu0 0
        %470 = vmatprep.subr.bf16.mxu0 0
        %471 = vmatpush2.bf16.xpose.msra.mxu0 0
        %472 = vmatprep.subr.bf16.mxu0 0
        %473 = vmatpush2.bf16.xpose.msra.mxu0 0
        %474 = vmatprep.subr.bf16.mxu0 0
        %475 = vmatpush2.bf16.xpose.msra.mxu0 0
        %476 = vmatprep.subr.bf16.mxu0 0
        %477 = vmatpush2.bf16.xpose.msra.mxu0 0
        %478 = vmatprep.subr.bf16.mxu0 0
        %479 = vmatpush2.bf16.xpose.msra.mxu0 0
        %480 = vmatprep.subr.bf16.mxu0 0
        %481 = vmatpush2.bf16.xpose.msra.mxu0 0
        %482 = vmatprep.mubr.bf16.mxu0 0
        %483 = vmatmul.mubr.bf16.gmra.mxu0 %v322
        %v484 = vpop.f32.mrf.mxu0
        %v485 = vadd.f32 0.0, %v484
        %v486 = vpop.f32.mrf.mxu0
        %v487 = vpop.f32.mrf.mxu0
        %v488 = vpop.f32.mrf.mxu0
        %489 = vdwg.mxu0
        %v490 = vmul.f32 %v365, 0.17677669
        %v491 = vpack.c.bf16 %v490, %v490
        %v492 = vpack.c.bf16 %v425, %v425
        %v493 = vpack.c.bf16 %v485, %v485
        %v494 = vld [vmem:[%s4] sm:$0xf]
        %vm495 = vcmask 64512
        %v497 = vsel %vm495, %v491, 0
        %v500 = vsel %vm495, %v494, 0
        %502 = vmatprep.subr.bf16.mxu0 0
        %503 = vmatpush1.bf16.xpose.msra.mxu0 0
        %504 = vmatprep.subr.bf16.mxu0 0
        %505 = vmatpush1.bf16.xpose.msra.mxu0 0
        %506 = vmatprep.subr.bf16.mxu0 0
        %507 = vmatpush1.bf16.xpose.msra.mxu0 0
        %508 = vmatprep.subr.bf16.mxu0 0
        %509 = vmatpush1.bf16.xpose.msra.mxu0 0
        %510 = vmatprep.subr.bf16.mxu0 0
        %511 = vmatpush1.bf16.xpose.msra.mxu0 0
        %512 = vmatprep.subr.bf16.mxu0 0
        %513 = vmatpush1.bf16.xpose.msra.mxu0 0
        %514 = vmatprep.subr.bf16.mxu0 0
        %515 = vmatpush1.bf16.xpose.msra.mxu0 0
        %516 = vmatprep.subr.bf16.mxu0 0
        %517 = vmatpush1.bf16.xpose.msra.mxu0 %v500
        %518 = vmatprep.subr.bf16.mxu0 0
        %519 = vmatpush2.bf16.xpose.msra.mxu0 0
        %520 = vmatprep.subr.bf16.mxu0 0
        %521 = vmatpush2.bf16.xpose.msra.mxu0 0
        %522 = vmatprep.subr.bf16.mxu0 0
        %523 = vmatpush2.bf16.xpose.msra.mxu0 0
        %524 = vmatprep.subr.bf16.mxu0 0
        %525 = vmatpush2.bf16.xpose.msra.mxu0 0
        %526 = vmatprep.subr.bf16.mxu0 0
        %527 = vmatpush2.bf16.xpose.msra.mxu0 0
        %528 = vmatprep.subr.bf16.mxu0 0
        %529 = vmatpush2.bf16.xpose.msra.mxu0 0
        %530 = vmatprep.subr.bf16.mxu0 0
        %531 = vmatpush2.bf16.xpose.msra.mxu0 0
        %532 = vmatprep.subr.bf16.mxu0 0
        %533 = vmatpush2.bf16.xpose.msra.mxu0 0
        %534 = vmatprep.mubr.bf16.mxu0 0
        %535 = vmatmul.mubr.bf16.gmra.mxu0 %v497
        %v536 = vpop.f32.mrf.mxu0
        %v537 = vadd.f32 0.0, %v536
        %v538 = vpop.f32.mrf.mxu0
        %v539 = vpop.f32.mrf.mxu0
        %v540 = vpop.f32.mrf.mxu0
        %541 = vdwg.mxu0
        %v543 = vrot.slane %v537, 1
        %vm545 = vcmask 1046528
        %v546 = vsel %vm545, %v543, 0.0
        %548 = vrot.lane.b32.xlu0 %v546, 9
        %v549 = vpop.permute.xlu0 %548
        %v551 = vsel %vm495, %v537, 0.0
        %vm552 = vcmask 72704
        %v553 = vsel %vm552, %v551, %v549
        %555 = vrot.lane.b32.xlu0 %v553, 1
        %v556 = vpop.permute.xlu0 %555
        %558 = vrot.lane.b32.xlu0 %v553, 2
        %v559 = vpop.permute.xlu0 %558
        %561 = vrot.lane.b32.xlu0 %v553, 3
        %v562 = vpop.permute.xlu0 %561
        %564 = vrot.lane.b32.xlu0 %v553, 4
        %v565 = vpop.permute.xlu0 %564
        %567 = vrot.lane.b32.xlu0 %v553, 5
        %v568 = vpop.permute.xlu0 %567
        %570 = vrot.lane.b32.xlu0 %v553, 6
        %v571 = vpop.permute.xlu0 %570
        %573 = vrot.lane.b32.xlu0 %v553, 7
        %v574 = vpop.permute.xlu0 %573
        %vm576 = vcmask 1040384
        %v577 = vsel %vm576, %v553, %v556
        %vm578 = vcmask 1041408
        %v579 = vsel %vm578, %v577, %v559
        %vm580 = vcmask 1042432
        %v581 = vsel %vm580, %v579, %v562
        %vm582 = vcmask 1043456
        %v583 = vsel %vm582, %v581, %v565
        %vm584 = vcmask 1044480
        %v585 = vsel %vm584, %v583, %v568
        %vm586 = vcmask 1045504
        %v587 = vsel %vm586, %v585, %v571
        %v588 = vsel %vm545, %v587, %v574
        %590 = vrot.lane.b32.xlu0 %v588, 121
        %v591 = vpop.permute.xlu0 %590
        %v594 = vsel %vm495, %v492, 0
        %596 = vmatprep.subr.bf16.mxu0 0
        %597 = vmatpush1.bf16.xpose.msra.mxu0 0
        %598 = vmatprep.subr.bf16.mxu0 0
        %599 = vmatpush1.bf16.xpose.msra.mxu0 0
        %600 = vmatprep.subr.bf16.mxu0 0
        %601 = vmatpush1.bf16.xpose.msra.mxu0 0
        %602 = vmatprep.subr.bf16.mxu0 0
        %603 = vmatpush1.bf16.xpose.msra.mxu0 0
        %604 = vmatprep.subr.bf16.mxu0 0
        %605 = vmatpush1.bf16.xpose.msra.mxu0 0
        %606 = vmatprep.subr.bf16.mxu0 0
        %607 = vmatpush1.bf16.xpose.msra.mxu0 0
        %608 = vmatprep.subr.bf16.mxu0 0
        %609 = vmatpush1.bf16.xpose.msra.mxu0 0
        %610 = vmatprep.subr.bf16.mxu0 0
        %611 = vmatpush1.bf16.xpose.msra.mxu0 %v594
        %612 = vmatprep.subr.bf16.mxu0 0
        %613 = vmatpush2.bf16.xpose.msra.mxu0 0
        %614 = vmatprep.subr.bf16.mxu0 0
        %615 = vmatpush2.bf16.xpose.msra.mxu0 0
        %616 = vmatprep.subr.bf16.mxu0 0
        %617 = vmatpush2.bf16.xpose.msra.mxu0 0
        %618 = vmatprep.subr.bf16.mxu0 0
        %619 = vmatpush2.bf16.xpose.msra.mxu0 0
        %620 = vmatprep.subr.bf16.mxu0 0
        %621 = vmatpush2.bf16.xpose.msra.mxu0 0
        %622 = vmatprep.subr.bf16.mxu0 0
        %623 = vmatpush2.bf16.xpose.msra.mxu0 0
        %624 = vmatprep.subr.bf16.mxu0 0
        %625 = vmatpush2.bf16.xpose.msra.mxu0 0
        %626 = vmatprep.subr.bf16.mxu0 0
        %627 = vmatpush2.bf16.xpose.msra.mxu0 0
        %628 = vmatprep.mubr.bf16.mxu0 0
        %629 = vmatmul.mubr.bf16.gmra.mxu0 %v497
        %v630 = vpop.f32.mrf.mxu0
        %v631 = vadd.f32 %v591, %v630
        %v632 = vpop.f32.mrf.mxu0
        %v633 = vpop.f32.mrf.mxu0
        %v634 = vpop.f32.mrf.mxu0
        %635 = vdwg.mxu0
        %v636 = vsel %vm495, %v631, -inf
        %637 = vmax.xlane.f32.xlu0 %v636
        %v638 = vpop.xlane.xlu0 %637
        %v639 = vsub.f32 %v631, %v638
        %v640 = vmul.f32 %v639, 1.442695
        %v641 = vpow.pop %v640
        %v642 = vsel %vm495, %v641, 0.0
        %643 = vadd.xlane.f32.xlu0 %v642
        %v644 = vpop.xlane.xlu0 %643
        %v645 = vrcp.pop %v644
        %v646 = vmul.f32 %v641, %v645
        %v647 = vpack.c.bf16 %v646, %v646
        %v649 = vsel %vm495, %v647, 0
        %v652 = vsel %vm582, %v493, 0
        %654 = vmatprep.subr.bf16.mxu0 0
        %655 = vmatpush1.bf16.msra.mxu0 0
        %656 = vmatprep.subr.bf16.mxu0 0
        %657 = vmatpush1.bf16.msra.mxu0 0
        %658 = vmatprep.subr.bf16.mxu0 0
        %659 = vmatpush1.bf16.msra.mxu0 0
        %660 = vmatprep.subr.bf16.mxu0 0
        %661 = vmatpush1.bf16.msra.mxu0 0
        %662 = vmatprep.subr.bf16.mxu0 0
        %663 = vmatpush1.bf16.msra.mxu0 0
        %664 = vmatprep.subr.bf16.mxu0 0
        %665 = vmatpush1.bf16.msra.mxu0 0
        %666 = vmatprep.subr.bf16.mxu0 0
        %667 = vmatpush1.bf16.msra.mxu0 0
        %668 = vmatprep.subr.bf16.mxu0 0
        %669 = vmatpush1.bf16.msra.mxu0 %v652
        %670 = vmatprep.subr.bf16.mxu0 0
        %671 = vmatpush2.bf16.msra.mxu0 0
        %672 = vmatprep.subr.bf16.mxu0 0
        %673 = vmatpush2.bf16.msra.mxu0 0
        %674 = vmatprep.subr.bf16.mxu0 0
        %675 = vmatpush2.bf16.msra.mxu0 0
        %676 = vmatprep.subr.bf16.mxu0 0
        %677 = vmatpush2.bf16.msra.mxu0 0
        %678 = vmatprep.subr.bf16.mxu0 0
        %679 = vmatpush2.bf16.msra.mxu0 0
        %680 = vmatprep.subr.bf16.mxu0 0
        %681 = vmatpush2.bf16.msra.mxu0 0
        %682 = vmatprep.subr.bf16.mxu0 0
        %683 = vmatpush2.bf16.msra.mxu0 0
        %684 = vmatprep.subr.bf16.mxu0 0
        %685 = vmatpush2.bf16.msra.mxu0 0
        %686 = vmatprep.mubr.bf16.mxu0 0
        %687 = vmatmul.mubr.bf16.gmra.mxu0 %v649
        %v688 = vpop.f32.mrf.mxu0
        %v689 = vadd.f32 0.0, %v688
        %v690 = vpop.f32.mrf.mxu0
        %v691 = vpop.f32.mrf.mxu0
        %v692 = vpop.f32.mrf.mxu0
        %693 = vdwg.mxu0
        %695 = vrot.lane.b32.xlu0 %v491, 120
        %v696 = vpop.permute.xlu0 %695
        %v698 = vsel %vm495, %v696, 0
        %700 = vmatprep.subr.bf16.mxu0 0
        %701 = vmatpush1.bf16.xpose.msra.mxu0 0
        %702 = vmatprep.subr.bf16.mxu0 0
        %703 = vmatpush1.bf16.xpose.msra.mxu0 0
        %704 = vmatprep.subr.bf16.mxu0 0
        %705 = vmatpush1.bf16.xpose.msra.mxu0 0
        %706 = vmatprep.subr.bf16.mxu0 0
        %707 = vmatpush1.bf16.xpose.msra.mxu0 0
        %708 = vmatprep.subr.bf16.mxu0 0
        %709 = vmatpush1.bf16.xpose.msra.mxu0 0
        %710 = vmatprep.subr.bf16.mxu0 0
        %711 = vmatpush1.bf16.xpose.msra.mxu0 0
        %712 = vmatprep.subr.bf16.mxu0 0
        %713 = vmatpush1.bf16.xpose.msra.mxu0 0
        %714 = vmatprep.subr.bf16.mxu0 0
        %715 = vmatpush1.bf16.xpose.msra.mxu0 %v500
        %716 = vmatprep.subr.bf16.mxu0 0
        %717 = vmatpush2.bf16.xpose.msra.mxu0 0
        %718 = vmatprep.subr.bf16.mxu0 0
        %719 = vmatpush2.bf16.xpose.msra.mxu0 0
        %720 = vmatprep.subr.bf16.mxu0 0
        %721 = vmatpush2.bf16.xpose.msra.mxu0 0
        %722 = vmatprep.subr.bf16.mxu0 0
        %723 = vmatpush2.bf16.xpose.msra.mxu0 0
        %724 = vmatprep.subr.bf16.mxu0 0
        %725 = vmatpush2.bf16.xpose.msra.mxu0 0
        %726 = vmatprep.subr.bf16.mxu0 0
        %727 = vmatpush2.bf16.xpose.msra.mxu0 0
        %728 = vmatprep.subr.bf16.mxu0 0
        %729 = vmatpush2.bf16.xpose.msra.mxu0 0
        %730 = vmatprep.subr.bf16.mxu0 0
        %731 = vmatpush2.bf16.xpose.msra.mxu0 0
        %732 = vmatprep.mubr.bf16.mxu0 0
        %733 = vmatmul.mubr.bf16.gmra.mxu0 %v698
        %v734 = vpop.f32.mrf.mxu0
        %v735 = vadd.f32 0.0, %v734
        %v736 = vpop.f32.mrf.mxu0
        %v737 = vpop.f32.mrf.mxu0
        %v738 = vpop.f32.mrf.mxu0
        %739 = vdwg.mxu0
        %v741 = vrot.slane %v735, 1
        %v743 = vsel %vm545, %v741, 0.0
        %745 = vrot.lane.b32.xlu0 %v743, 9
        %v746 = vpop.permute.xlu0 %745
        %v748 = vsel %vm495, %v735, 0.0
        %v749 = vsel %vm552, %v748, %v746
        %751 = vrot.lane.b32.xlu0 %v749, 1
        %v752 = vpop.permute.xlu0 %751
        %754 = vrot.lane.b32.xlu0 %v749, 2
        %v755 = vpop.permute.xlu0 %754
        %757 = vrot.lane.b32.xlu0 %v749, 3
        %v758 = vpop.permute.xlu0 %757
        %760 = vrot.lane.b32.xlu0 %v749, 4
        %v761 = vpop.permute.xlu0 %760
        %763 = vrot.lane.b32.xlu0 %v749, 5
        %v764 = vpop.permute.xlu0 %763
        %766 = vrot.lane.b32.xlu0 %v749, 6
        %v767 = vpop.permute.xlu0 %766
        %769 = vrot.lane.b32.xlu0 %v749, 7
        %v770 = vpop.permute.xlu0 %769
        %v772 = vsel %vm576, %v749, %v752
        %v773 = vsel %vm578, %v772, %v755
        %v774 = vsel %vm580, %v773, %v758
        %v775 = vsel %vm582, %v774, %v761
        %v776 = vsel %vm584, %v775, %v764
        %v777 = vsel %vm586, %v776, %v767
        %v778 = vsel %vm545, %v777, %v770
        %780 = vrot.lane.b32.xlu0 %v492, 120
        %v781 = vpop.permute.xlu0 %780
        %783 = vrot.lane.b32.xlu0 %v778, 121
        %v784 = vpop.permute.xlu0 %783
        %v787 = vsel %vm495, %v781, 0
        %789 = vmatprep.subr.bf16.mxu0 0
        %790 = vmatpush1.bf16.xpose.msra.mxu0 0
        %791 = vmatprep.subr.bf16.mxu0 0
        %792 = vmatpush1.bf16.xpose.msra.mxu0 0
        %793 = vmatprep.subr.bf16.mxu0 0
        %794 = vmatpush1.bf16.xpose.msra.mxu0 0
        %795 = vmatprep.subr.bf16.mxu0 0
        %796 = vmatpush1.bf16.xpose.msra.mxu0 0
        %797 = vmatprep.subr.bf16.mxu0 0
        %798 = vmatpush1.bf16.xpose.msra.mxu0 0
        %799 = vmatprep.subr.bf16.mxu0 0
        %800 = vmatpush1.bf16.xpose.msra.mxu0 0
        %801 = vmatprep.subr.bf16.mxu0 0
        %802 = vmatpush1.bf16.xpose.msra.mxu0 0
        %803 = vmatprep.subr.bf16.mxu0 0
        %804 = vmatpush1.bf16.xpose.msra.mxu0 %v787
        %805 = vmatprep.subr.bf16.mxu0 0
        %806 = vmatpush2.bf16.xpose.msra.mxu0 0
        %807 = vmatprep.subr.bf16.mxu0 0
        %808 = vmatpush2.bf16.xpose.msra.mxu0 0
        %809 = vmatprep.subr.bf16.mxu0 0
        %810 = vmatpush2.bf16.xpose.msra.mxu0 0
        %811 = vmatprep.subr.bf16.mxu0 0
        %812 = vmatpush2.bf16.xpose.msra.mxu0 0
        %813 = vmatprep.subr.bf16.mxu0 0
        %814 = vmatpush2.bf16.xpose.msra.mxu0 0
        %815 = vmatprep.subr.bf16.mxu0 0
        %816 = vmatpush2.bf16.xpose.msra.mxu0 0
        %817 = vmatprep.subr.bf16.mxu0 0
        %818 = vmatpush2.bf16.xpose.msra.mxu0 0
        %819 = vmatprep.subr.bf16.mxu0 0
        %820 = vmatpush2.bf16.xpose.msra.mxu0 0
        %821 = vmatprep.mubr.bf16.mxu0 0
        %822 = vmatmul.mubr.bf16.gmra.mxu0 %v698
        %v823 = vpop.f32.mrf.mxu0
        %v824 = vadd.f32 %v784, %v823
        %v825 = vpop.f32.mrf.mxu0
        %v826 = vpop.f32.mrf.mxu0
        %v827 = vpop.f32.mrf.mxu0
        %828 = vdwg.mxu0
        %v829 = vsel %vm495, %v824, -inf
        %830 = vmax.xlane.f32.xlu0 %v829
        %v831 = vpop.xlane.xlu0 %830
        %v832 = vsub.f32 %v824, %v831
        %v833 = vmul.f32 %v832, 1.442695
        %v834 = vpow.pop %v833
        %v835 = vsel %vm495, %v834, 0.0
        %836 = vadd.xlane.f32.xlu0 %v835
        %v837 = vpop.xlane.xlu0 %836
        %v838 = vrcp.pop %v837
        %v839 = vmul.f32 %v834, %v838
        %v840 = vpack.c.bf16 %v839, %v839
        %842 = vrot.lane.b32.xlu0 %v493, 120
        %v843 = vpop.permute.xlu0 %842
        %v845 = vsel %vm495, %v840, 0
        %v848 = vsel %vm582, %v843, 0
        %850 = vmatprep.subr.bf16.mxu0 0
        %851 = vmatpush1.bf16.msra.mxu0 0
        %852 = vmatprep.subr.bf16.mxu0 0
        %853 = vmatpush1.bf16.msra.mxu0 0
        %854 = vmatprep.subr.bf16.mxu0 0
        %855 = vmatpush1.bf16.msra.mxu0 0
        %856 = vmatprep.subr.bf16.mxu0 0
        %857 = vmatpush1.bf16.msra.mxu0 0
        %858 = vmatprep.subr.bf16.mxu0 0
        %859 = vmatpush1.bf16.msra.mxu0 0
        %860 = vmatprep.subr.bf16.mxu0 0
        %861 = vmatpush1.bf16.msra.mxu0 0
        %862 = vmatprep.subr.bf16.mxu0 0
        %863 = vmatpush1.bf16.msra.mxu0 0
        %864 = vmatprep.subr.bf16.mxu0 0
        %865 = vmatpush1.bf16.msra.mxu0 %v848
        %866 = vmatprep.subr.bf16.mxu0 0
        %867 = vmatpush2.bf16.msra.mxu0 0
        %868 = vmatprep.subr.bf16.mxu0 0
        %869 = vmatpush2.bf16.msra.mxu0 0
        %870 = vmatprep.subr.bf16.mxu0 0
        %871 = vmatpush2.bf16.msra.mxu0 0
        %872 = vmatprep.subr.bf16.mxu0 0
        %873 = vmatpush2.bf16.msra.mxu0 0
        %874 = vmatprep.subr.bf16.mxu0 0
        %875 = vmatpush2.bf16.msra.mxu0 0
        %876 = vmatprep.subr.bf16.mxu0 0
        %877 = vmatpush2.bf16.msra.mxu0 0
        %878 = vmatprep.subr.bf16.mxu0 0
        %879 = vmatpush2.bf16.msra.mxu0 0
        %880 = vmatprep.subr.bf16.mxu0 0
        %881 = vmatpush2.bf16.msra.mxu0 0
        %882 = vmatprep.mubr.bf16.mxu0 0
        %883 = vmatmul.mubr.bf16.gmra.mxu0 %v845
        %v884 = vpop.f32.mrf.mxu0
        %v885 = vadd.f32 0.0, %v884
        %v886 = vpop.f32.mrf.mxu0
        %v887 = vpop.f32.mrf.mxu0
        %v888 = vpop.f32.mrf.mxu0
        %889 = vdwg.mxu0
        %890 = vrot.lane.b32.xlu0 %v491, 112
        %v891 = vpop.permute.xlu0 %890
        %v893 = vsel %vm495, %v891, 0
        %895 = vmatprep.subr.bf16.mxu0 0
        %896 = vmatpush1.bf16.xpose.msra.mxu0 0
        %897 = vmatprep.subr.bf16.mxu0 0
        %898 = vmatpush1.bf16.xpose.msra.mxu0 0
        %899 = vmatprep.subr.bf16.mxu0 0
        %900 = vmatpush1.bf16.xpose.msra.mxu0 0
        %901 = vmatprep.subr.bf16.mxu0 0
        %902 = vmatpush1.bf16.xpose.msra.mxu0 0
        %903 = vmatprep.subr.bf16.mxu0 0
        %904 = vmatpush1.bf16.xpose.msra.mxu0 0
        %905 = vmatprep.subr.bf16.mxu0 0
        %906 = vmatpush1.bf16.xpose.msra.mxu0 0
        %907 = vmatprep.subr.bf16.mxu0 0
        %908 = vmatpush1.bf16.xpose.msra.mxu0 0
        %909 = vmatprep.subr.bf16.mxu0 0
        %910 = vmatpush1.bf16.xpose.msra.mxu0 %v500
        %911 = vmatprep.subr.bf16.mxu0 0
        %912 = vmatpush2.bf16.xpose.msra.mxu0 0
        %913 = vmatprep.subr.bf16.mxu0 0
        %914 = vmatpush2.bf16.xpose.msra.mxu0 0
        %915 = vmatprep.subr.bf16.mxu0 0
        %916 = vmatpush2.bf16.xpose.msra.mxu0 0
        %917 = vmatprep.subr.bf16.mxu0 0
        %918 = vmatpush2.bf16.xpose.msra.mxu0 0
        %919 = vmatprep.subr.bf16.mxu0 0
        %920 = vmatpush2.bf16.xpose.msra.mxu0 0
        %921 = vmatprep.subr.bf16.mxu0 0
        %922 = vmatpush2.bf16.xpose.msra.mxu0 0
        %923 = vmatprep.subr.bf16.mxu0 0
        %924 = vmatpush2.bf16.xpose.msra.mxu0 0
        %925 = vmatprep.subr.bf16.mxu0 0
        %926 = vmatpush2.bf16.xpose.msra.mxu0 0
        %927 = vmatprep.mubr.bf16.mxu0 0
        %928 = vmatmul.mubr.bf16.gmra.mxu0 %v893
        %v929 = vpop.f32.mrf.mxu0
        %v930 = vadd.f32 0.0, %v929
        %v931 = vpop.f32.mrf.mxu0
        %v932 = vpop.f32.mrf.mxu0
        %v933 = vpop.f32.mrf.mxu0
        %934 = vdwg.mxu0
        %v936 = vrot.slane %v930, 1
        %v938 = vsel %vm545, %v936, 0.0
        %940 = vrot.lane.b32.xlu0 %v938, 9
        %v941 = vpop.permute.xlu0 %940
        %v943 = vsel %vm495, %v930, 0.0
        %v944 = vsel %vm552, %v943, %v941
        %946 = vrot.lane.b32.xlu0 %v944, 1
        %v947 = vpop.permute.xlu0 %946
        %949 = vrot.lane.b32.xlu0 %v944, 2
        %v950 = vpop.permute.xlu0 %949
        %952 = vrot.lane.b32.xlu0 %v944, 3
        %v953 = vpop.permute.xlu0 %952
        %955 = vrot.lane.b32.xlu0 %v944, 4
        %v956 = vpop.permute.xlu0 %955
        %958 = vrot.lane.b32.xlu0 %v944, 5
        %v959 = vpop.permute.xlu0 %958
        %961 = vrot.lane.b32.xlu0 %v944, 6
        %v962 = vpop.permute.xlu0 %961
        %964 = vrot.lane.b32.xlu0 %v944, 7
        %v965 = vpop.permute.xlu0 %964
        %v967 = vsel %vm576, %v944, %v947
        %v968 = vsel %vm578, %v967, %v950
        %v969 = vsel %vm580, %v968, %v953
        %v970 = vsel %vm582, %v969, %v956
        %v971 = vsel %vm584, %v970, %v959
        %v972 = vsel %vm586, %v971, %v962
        %v973 = vsel %vm545, %v972, %v965
        %974 = vrot.lane.b32.xlu0 %v492, 112
        %v975 = vpop.permute.xlu0 %974
        %977 = vrot.lane.b32.xlu0 %v973, 121
        %v978 = vpop.permute.xlu0 %977
        %v981 = vsel %vm495, %v975, 0
        %983 = vmatprep.subr.bf16.mxu0 0
        %984 = vmatpush1.bf16.xpose.msra.mxu0 0
        %985 = vmatprep.subr.bf16.mxu0 0
        %986 = vmatpush1.bf16.xpose.msra.mxu0 0
        %987 = vmatprep.subr.bf16.mxu0 0
        %988 = vmatpush1.bf16.xpose.msra.mxu0 0
        %989 = vmatprep.subr.bf16.mxu0 0
        %990 = vmatpush1.bf16.xpose.msra.mxu0 0
        %991 = vmatprep.subr.bf16.mxu0 0
        %992 = vmatpush1.bf16.xpose.msra.mxu0 0
        %993 = vmatprep.subr.bf16.mxu0 0
        %994 = vmatpush1.bf16.xpose.msra.mxu0 0
        %995 = vmatprep.subr.bf16.mxu0 0
        %996 = vmatpush1.bf16.xpose.msra.mxu0 0
        %997 = vmatprep.subr.bf16.mxu0 0
        %998 = vmatpush1.bf16.xpose.msra.mxu0 %v981
        %999 = vmatprep.subr.bf16.mxu0 0
        %1000 = vmatpush2.bf16.xpose.msra.mxu0 0
        %1001 = vmatprep.subr.bf16.mxu0 0
        %1002 = vmatpush2.bf16.xpose.msra.mxu0 0
        %1003 = vmatprep.subr.bf16.mxu0 0
        %1004 = vmatpush2.bf16.xpose.msra.mxu0 0
        %1005 = vmatprep.subr.bf16.mxu0 0
        %1006 = vmatpush2.bf16.xpose.msra.mxu0 0
        %1007 = vmatprep.subr.bf16.mxu0 0
        %1008 = vmatpush2.bf16.xpose.msra.mxu0 0
        %1009 = vmatprep.subr.bf16.mxu0 0
        %1010 = vmatpush2.bf16.xpose.msra.mxu0 0
        %1011 = vmatprep.subr.bf16.mxu0 0
        %1012 = vmatpush2.bf16.xpose.msra.mxu0 0
        %1013 = vmatprep.subr.bf16.mxu0 0
        %1014 = vmatpush2.bf16.xpose.msra.mxu0 0
        %1015 = vmatprep.mubr.bf16.mxu0 0
        %1016 = vmatmul.mubr.bf16.gmra.mxu0 %v893
        %v1017 = vpop.f32.mrf.mxu0
        %v1018 = vadd.f32 %v978, %v1017
        %v1019 = vpop.f32.mrf.mxu0
        %v1020 = vpop.f32.mrf.mxu0
        %v1021 = vpop.f32.mrf.mxu0
        %1022 = vdwg.mxu0
        %v1023 = vsel %vm495, %v1018, -inf
        %1024 = vmax.xlane.f32.xlu0 %v1023
        %v1025 = vpop.xlane.xlu0 %1024
        %v1026 = vsub.f32 %v1018, %v1025
        %v1027 = vmul.f32 %v1026, 1.442695
        %v1028 = vpow.pop %v1027
        %v1029 = vsel %vm495, %v1028, 0.0
        %1030 = vadd.xlane.f32.xlu0 %v1029
        %v1031 = vpop.xlane.xlu0 %1030
        %v1032 = vrcp.pop %v1031
        %v1033 = vmul.f32 %v1028, %v1032
        %v1034 = vpack.c.bf16 %v1033, %v1033
        %1035 = vrot.lane.b32.xlu0 %v493, 112
        %v1036 = vpop.permute.xlu0 %1035
        %v1038 = vsel %vm495, %v1034, 0
        %v1041 = vsel %vm582, %v1036, 0
        %1043 = vmatprep.subr.bf16.mxu0 0
        %1044 = vmatpush1.bf16.msra.mxu0 0
        %1045 = vmatprep.subr.bf16.mxu0 0
        %1046 = vmatpush1.bf16.msra.mxu0 0
        %1047 = vmatprep.subr.bf16.mxu0 0
        %1048 = vmatpush1.bf16.msra.mxu0 0
        %1049 = vmatprep.subr.bf16.mxu0 0
        %1050 = vmatpush1.bf16.msra.mxu0 0
        %1051 = vmatprep.subr.bf16.mxu0 0
        %1052 = vmatpush1.bf16.msra.mxu0 0
        %1053 = vmatprep.subr.bf16.mxu0 0
        %1054 = vmatpush1.bf16.msra.mxu0 0
        %1055 = vmatprep.subr.bf16.mxu0 0
        %1056 = vmatpush1.bf16.msra.mxu0 0
        %1057 = vmatprep.subr.bf16.mxu0 0
        %1058 = vmatpush1.bf16.msra.mxu0 %v1041
        %1059 = vmatprep.subr.bf16.mxu0 0
        %1060 = vmatpush2.bf16.msra.mxu0 0
        %1061 = vmatprep.subr.bf16.mxu0 0
        %1062 = vmatpush2.bf16.msra.mxu0 0
        %1063 = vmatprep.subr.bf16.mxu0 0
        %1064 = vmatpush2.bf16.msra.mxu0 0
        %1065 = vmatprep.subr.bf16.mxu0 0
        %1066 = vmatpush2.bf16.msra.mxu0 0
        %1067 = vmatprep.subr.bf16.mxu0 0
        %1068 = vmatpush2.bf16.msra.mxu0 0
        %1069 = vmatprep.subr.bf16.mxu0 0
        %1070 = vmatpush2.bf16.msra.mxu0 0
        %1071 = vmatprep.subr.bf16.mxu0 0
        %1072 = vmatpush2.bf16.msra.mxu0 0
        %1073 = vmatprep.subr.bf16.mxu0 0
        %1074 = vmatpush2.bf16.msra.mxu0 0
        %1075 = vmatprep.mubr.bf16.mxu0 0
        %1076 = vmatmul.mubr.bf16.gmra.mxu0 %v1038
        %v1077 = vpop.f32.mrf.mxu0
        %v1078 = vadd.f32 0.0, %v1077
        %v1079 = vpop.f32.mrf.mxu0
        %v1080 = vpop.f32.mrf.mxu0
        %v1081 = vpop.f32.mrf.mxu0
        %1082 = vdwg.mxu0
        %1083 = vrot.lane.b32.xlu0 %v491, 104
        %v1084 = vpop.permute.xlu0 %1083
        %v1086 = vsel %vm495, %v1084, 0
        %1088 = vmatprep.subr.bf16.mxu0 0
        %1089 = vmatpush1.bf16.xpose.msra.mxu0 0
        %1090 = vmatprep.subr.bf16.mxu0 0
        %1091 = vmatpush1.bf16.xpose.msra.mxu0 0
        %1092 = vmatprep.subr.bf16.mxu0 0
        %1093 = vmatpush1.bf16.xpose.msra.mxu0 0
        %1094 = vmatprep.subr.bf16.mxu0 0
        %1095 = vmatpush1.bf16.xpose.msra.mxu0 0
        %1096 = vmatprep.subr.bf16.mxu0 0
        %1097 = vmatpush1.bf16.xpose.msra.mxu0 0
        %1098 = vmatprep.subr.bf16.mxu0 0
        %1099 = vmatpush1.bf16.xpose.msra.mxu0 0
        %1100 = vmatprep.subr.bf16.mxu0 0
        %1101 = vmatpush1.bf16.xpose.msra.mxu0 0
        %1102 = vmatprep.subr.bf16.mxu0 0
        %1103 = vmatpush1.bf16.xpose.msra.mxu0 %v500
        %1104 = vmatprep.subr.bf16.mxu0 0
        %1105 = vmatpush2.bf16.xpose.msra.mxu0 0
        %1106 = vmatprep.subr.bf16.mxu0 0
        %1107 = vmatpush2.bf16.xpose.msra.mxu0 0
        %1108 = vmatprep.subr.bf16.mxu0 0
        %1109 = vmatpush2.bf16.xpose.msra.mxu0 0
        %1110 = vmatprep.subr.bf16.mxu0 0
        %1111 = vmatpush2.bf16.xpose.msra.mxu0 0
        %1112 = vmatprep.subr.bf16.mxu0 0
        %1113 = vmatpush2.bf16.xpose.msra.mxu0 0
        %1114 = vmatprep.subr.bf16.mxu0 0
        %1115 = vmatpush2.bf16.xpose.msra.mxu0 0
        %1116 = vmatprep.subr.bf16.mxu0 0
        %1117 = vmatpush2.bf16.xpose.msra.mxu0 0
        %1118 = vmatprep.subr.bf16.mxu0 0
        %1119 = vmatpush2.bf16.xpose.msra.mxu0 0
        %1120 = vmatprep.mubr.bf16.mxu0 0
        %1121 = vmatmul.mubr.bf16.gmra.mxu0 %v1086
        %v1122 = vpop.f32.mrf.mxu0
        %v1123 = vadd.f32 0.0, %v1122
        %v1124 = vpop.f32.mrf.mxu0
        %v1125 = vpop.f32.mrf.mxu0
        %v1126 = vpop.f32.mrf.mxu0
        %1127 = vdwg.mxu0
        %v1129 = vrot.slane %v1123, 1
        %v1131 = vsel %vm545, %v1129, 0.0
        %1133 = vrot.lane.b32.xlu0 %v1131, 9
        %v1134 = vpop.permute.xlu0 %1133
        %v1136 = vsel %vm495, %v1123, 0.0
        %v1137 = vsel %vm552, %v1136, %v1134
        %1139 = vrot.lane.b32.xlu0 %v1137, 1
        %v1140 = vpop.permute.xlu0 %1139
        %1142 = vrot.lane.b32.xlu0 %v1137, 2
        %v1143 = vpop.permute.xlu0 %1142
        %1145 = vrot.lane.b32.xlu0 %v1137, 3
        %v1146 = vpop.permute.xlu0 %1145
        %1148 = vrot.lane.b32.xlu0 %v1137, 4
        %v1149 = vpop.permute.xlu0 %1148
        %1151 = vrot.lane.b32.xlu0 %v1137, 5
        %v1152 = vpop.permute.xlu0 %1151
        %1154 = vrot.lane.b32.xlu0 %v1137, 6
        %v1155 = vpop.permute.xlu0 %1154
        %1157 = vrot.lane.b32.xlu0 %v1137, 7
        %v1158 = vpop.permute.xlu0 %1157
        %v1160 = vsel %vm576, %v1137, %v1140
        %v1161 = vsel %vm578, %v1160, %v1143
        %v1162 = vsel %vm580, %v1161, %v1146
        %v1163 = vsel %vm582, %v1162, %v1149
        %v1164 = vsel %vm584, %v1163, %v1152
        %v1165 = vsel %vm586, %v1164, %v1155
        %v1166 = vsel %vm545, %v1165, %v1158
        %1167 = vrot.lane.b32.xlu0 %v492, 104
        %v1168 = vpop.permute.xlu0 %1167
        %1170 = vrot.lane.b32.xlu0 %v1166, 121
        %v1171 = vpop.permute.xlu0 %1170
        %v1174 = vsel %vm495, %v1168, 0
        %1176 = vmatprep.subr.bf16.mxu0 0
        %1177 = vmatpush1.bf16.xpose.msra.mxu0 0
        %1178 = vmatprep.subr.bf16.mxu0 0
        %1179 = vmatpush1.bf16.xpose.msra.mxu0 0
        %1180 = vmatprep.subr.bf16.mxu0 0
        %1181 = vmatpush1.bf16.xpose.msra.mxu0 0
        %1182 = vmatprep.subr.bf16.mxu0 0
        %1183 = vmatpush1.bf16.xpose.msra.mxu0 0
        %1184 = vmatprep.subr.bf16.mxu0 0
        %1185 = vmatpush1.bf16.xpose.msra.mxu0 0
        %1186 = vmatprep.subr.bf16.mxu0 0
        %1187 = vmatpush1.bf16.xpose.msra.mxu0 0
        %1188 = vmatprep.subr.bf16.mxu0 0
        %1189 = vmatpush1.bf16.xpose.msra.mxu0 0
        %1190 = vmatprep.subr.bf16.mxu0 0
        %1191 = vmatpush1.bf16.xpose.msra.mxu0 %v1174
        %1192 = vmatprep.subr.bf16.mxu0 0
        %1193 = vmatpush2.bf16.xpose.msra.mxu0 0
        %1194 = vmatprep.subr.bf16.mxu0 0
        %1195 = vmatpush2.bf16.xpose.msra.mxu0 0
        %1196 = vmatprep.subr.bf16.mxu0 0
        %1197 = vmatpush2.bf16.xpose.msra.mxu0 0
        %1198 = vmatprep.subr.bf16.mxu0 0
        %1199 = vmatpush2.bf16.xpose.msra.mxu0 0
        %1200 = vmatprep.subr.bf16.mxu0 0
        %1201 = vmatpush2.bf16.xpose.msra.mxu0 0
        %1202 = vmatprep.subr.bf16.mxu0 0
        %1203 = vmatpush2.bf16.xpose.msra.mxu0 0
        %1204 = vmatprep.subr.bf16.mxu0 0
        %1205 = vmatpush2.bf16.xpose.msra.mxu0 0
        %1206 = vmatprep.subr.bf16.mxu0 0
        %1207 = vmatpush2.bf16.xpose.msra.mxu0 0
        %1208 = vmatprep.mubr.bf16.mxu0 0
        %1209 = vmatmul.mubr.bf16.gmra.mxu0 %v1086
        %v1210 = vpop.f32.mrf.mxu0
        %v1211 = vadd.f32 %v1171, %v1210
        %v1212 = vpop.f32.mrf.mxu0
        %v1213 = vpop.f32.mrf.mxu0
        %v1214 = vpop.f32.mrf.mxu0
        %1215 = vdwg.mxu0
        %v1216 = vsel %vm495, %v1211, -inf
        %1217 = vmax.xlane.f32.xlu0 %v1216
        %v1218 = vpop.xlane.xlu0 %1217
        %v1219 = vsub.f32 %v1211, %v1218
        %v1220 = vmul.f32 %v1219, 1.442695
        %v1221 = vpow.pop %v1220
        %v1222 = vsel %vm495, %v1221, 0.0
        %1223 = vadd.xlane.f32.xlu0 %v1222
        %v1224 = vpop.xlane.xlu0 %1223
        %v1225 = vrcp.pop %v1224
        %v1226 = vmul.f32 %v1221, %v1225
        %v1227 = vpack.c.bf16 %v1226, %v1226
        %1228 = vrot.lane.b32.xlu0 %v493, 104
        %v1229 = vpop.permute.xlu0 %1228
        %v1231 = vsel %vm495, %v1227, 0
        %v1234 = vsel %vm582, %v1229, 0
        %1236 = vmatprep.subr.bf16.mxu0 0
        %1237 = vmatpush1.bf16.msra.mxu0 0
        %1238 = vmatprep.subr.bf16.mxu0 0
        %1239 = vmatpush1.bf16.msra.mxu0 0
        %1240 = vmatprep.subr.bf16.mxu0 0
        %1241 = vmatpush1.bf16.msra.mxu0 0
        %1242 = vmatprep.subr.bf16.mxu0 0
        %1243 = vmatpush1.bf16.msra.mxu0 0
        %1244 = vmatprep.subr.bf16.mxu0 0
        %1245 = vmatpush1.bf16.msra.mxu0 0
        %1246 = vmatprep.subr.bf16.mxu0 0
        %1247 = vmatpush1.bf16.msra.mxu0 0
        %1248 = vmatprep.subr.bf16.mxu0 0
        %1249 = vmatpush1.bf16.msra.mxu0 0
        %1250 = vmatprep.subr.bf16.mxu0 0
        %1251 = vmatpush1.bf16.msra.mxu0 %v1234
        %1252 = vmatprep.subr.bf16.mxu0 0
        %1253 = vmatpush2.bf16.msra.mxu0 0
        %1254 = vmatprep.subr.bf16.mxu0 0
        %1255 = vmatpush2.bf16.msra.mxu0 0
        %1256 = vmatprep.subr.bf16.mxu0 0
        %1257 = vmatpush2.bf16.msra.mxu0 0
        %1258 = vmatprep.subr.bf16.mxu0 0
        %1259 = vmatpush2.bf16.msra.mxu0 0
        %1260 = vmatprep.subr.bf16.mxu0 0
        %1261 = vmatpush2.bf16.msra.mxu0 0
        %1262 = vmatprep.subr.bf16.mxu0 0
        %1263 = vmatpush2.bf16.msra.mxu0 0
        %1264 = vmatprep.subr.bf16.mxu0 0
        %1265 = vmatpush2.bf16.msra.mxu0 0
        %1266 = vmatprep.subr.bf16.mxu0 0
        %1267 = vmatpush2.bf16.msra.mxu0 0
        %1268 = vmatprep.mubr.bf16.mxu0 0
        %1269 = vmatmul.mubr.bf16.gmra.mxu0 %v1231
        %v1270 = vpop.f32.mrf.mxu0
        %v1271 = vadd.f32 0.0, %v1270
        %v1272 = vpop.f32.mrf.mxu0
        %v1273 = vpop.f32.mrf.mxu0
        %v1274 = vpop.f32.mrf.mxu0
        %1275 = vdwg.mxu0
        %1277 = vrot.lane.b32.xlu0 %v885, 8
        %v1278 = vpop.permute.xlu0 %1277
        %1281 = vrot.lane.b32.xlu0 %v1078, 16
        %v1282 = vpop.permute.xlu0 %1281
        %1285 = vrot.lane.b32.xlu0 %v1271, 24
        %v1286 = vpop.permute.xlu0 %1285
        %v1288 = vsel %vm495, %v689, %v1278
        %vm1289 = vcmask 130048
        %v1290 = vsel %vm1289, %v1288, %v1282
        %vm1291 = vcmask 195584
        %v1292 = vsel %vm1291, %v1290, %v1286
        %v1293 = vsel %vm320, %v1292, 0.0
        %1294 = vadd.xlane.f32.xlu0 %v1293
        %v1295 = vpop.xlane.xlu0 %1294
        %v1296 = vrcp.pop 32.0
        %v1297 = vmul.f32 %v1295, %v1296
        %v1298 = vsub.f32 %v1292, %v1297
        %v1299 = vmul.f32 %v1298, %v1298
        %v1300 = vsel %vm320, %v1299, 0.0
        %1301 = vadd.xlane.f32.xlu0 %v1300
        %v1302 = vpop.xlane.xlu0 %1301
        %v1303 = vmul.f32 %v1302, %v1296
        %v1304 = vadd.f32 %v1303, 1e-05
        %v1305 = vrsqrt.pop %v1304
        %v1306 = vmul.f32 %v1298, %v1305
        %v1307 = vld [vmem:[%s5] sm:$0x1]
        %v1309 = vlaneseq
        %v1310 = vshrl.u32 %v1309, 7
        %v1311 = vsub.s32 0, %v1310
        %v1312 = vrot.slane %v1307, %v1311
        %v1314 = vmul.f32 %v1306, %v1312
        %v1315 = vld [vmem:[%s6] sm:$0x1]
        %v1317 = vlaneseq
        %v1318 = vshrl.u32 %v1317, 7
        %v1319 = vsub.s32 0, %v1318
        %v1320 = vrot.slane %v1315, %v1319
        %v1322 = vadd.f32 %v1314, %v1320
        %1323 = vst.msk [vmem:[%s299] sm:$0xff] %vm320, %v1322
        %s1324 = sand.u32 %s183, 1
        %s1325 = scalar_lea.sflag [#allocation4], %s1324
        %s1326 = sand.u32 %s183, 1
        %s1327 = smul.addr %s1326, 8
        %s1328 = scalar_lea.vmem [#allocation7], %s1327
        // Predicated region
        $region57: #{attention_rel_vec.1} parent=47 // pred_check
          %p1329 = pneg %p193
        $region58: #{attention_rel_vec.1} parent=47 // pred_check_branch
          %1331 = sbr.rel (%p1329) target = $region60
        $region59: #{attention_rel_vec.1} parent=47 // pred_region
          %s1333 = ssub.s32 128, 128
          %1334 = vsyncadd %s1325, %s1333
          %s1335 = smul.addr %s23, 128
          %s1336 = scalar_lea.hbm %s7, %s1335
          %s1338 = sshll.u32 %s1328, 4
          %s1339 = int_to_ptr.vmem [resolvable:$true] %s1338
          %1341 = dma.vmem_to_hbm [thread:$0]  %s1339, 128, %s1336, %s1325
        $region60: #{attention_rel_vec.1} parent=47 // pred_fallthru
          _
      $region48: #{attention_rel_vec.1} parent=5 // pred_fallthru
        _
      %p1342 = scmp.le.s32.totalorder 2, %s18
      // Predicated region
      $region61: #{attention_rel_vec.1} parent=5 // pred_check
        %p1343 = pneg %p1342
      $region62: #{attention_rel_vec.1} parent=5 // pred_check_branch
        %1345 = sbr.rel (%p1343) target = $region64
      $region63: #{attention_rel_vec.1} parent=5 // pred_region
        %s1346 = ssub.s32 %s18, 2
        // Predicated region
        $region65: #{attention_rel_vec.1} parent=63 // pred_check
          %p1347 = pneg %p199
        $region66: #{attention_rel_vec.1} parent=63 // pred_check_branch
          %1349 = sbr.rel (%p1347) target = $region68
        $region67: #{attention_rel_vec.1} parent=63 // pred_region
          %s1350 = sand.u32 %s184, 1
          %s1351 = scalar_lea.sflag [#allocation4], %s1350
          %s1352 = sand.u32 %s184, 1
          %s1353 = smul.addr %s1352, 8
          %s1354 = scalar_lea.vmem [#allocation7], %s1353
          %1355 = dma.done %s1351, 128
        $region68: #{attention_rel_vec.1} parent=63 // pred_fallthru
          _
      $region64: #{attention_rel_vec.1} parent=5 // pred_fallthru
        _
    $region6: #{attention_rel_vec.1} parent=1 // loop_footer
      %s22 = sadd.s32 1, %s18
    $region7: #{attention_rel_vec.1} parent=1 // loop_footer_branch
      %17 = sbr.rel target = $region3
    $region8: #{attention_rel_vec.1} parent=1 // loop_exit
      _
    %1356 = vsyncpa [#allocation3], 1
    %s1357 = scalar_lea.sflag [#allocation3], 1
    %1358 = vsyncpa %s1357, 1
    %1359 = vsyncpa [#allocation6], 1
    %1360 = vsyncpa [#allocation4], 1
    %s1361 = scalar_lea.sflag [#allocation4], 1
    %1362 = vsyncpa %s1361, 1

</llo_original>
